<compile_context>
chip_gen: v6e
topology: v6e:2x2x1
jax: 0.10.0
libtpu: 0.0.40
codegen_flags: <defaults>
</compile_context>

<pallas_src>
import math

import numpy as np

import jax
import jax.numpy as jnp
from jax.experimental import pallas as pl
from jax.experimental.pallas import tpu as pltpu

# ----------------------------- configuration --------------------------------
LATENT = 32          # latent_dim   (512 in the full model)
STYLE = 32           # style_dim    (512 in the full model)
COND = 16            # condition_dim (64 in the full model)
MAP_LAYERS = 8       # mapping network depth (same as full model)
CHANNELS = [32, 16, 8]        # ([512,512,512,512,256,128,64,32] in full model)
CONST_HW = (4, 8)             # constant input spatial size (same as full model)
N_BLOCKS = len(CHANNELS)
TARGET = (CONST_HW[0] * 2 ** (N_BLOCKS - 1), CONST_HW[1] * 2 ** (N_BLOCKS - 1))
NEG_SLOPE = 0.2


def _lrelu(v):
    return jnp.where(v >= 0.0, v, NEG_SLOPE * v)


# ------------------- fused style-network Pallas kernel ----------------------
def pallas_styles(z, c_in, sp, truncation=1.0):
    """Condition encoder + 8-layer mapping net + ALL per-conv modulation
    EqualLinears (already tap-tiled) fused into a single pallas_call.
    Returns (B, K_total) f32 where K_total = sum over convs of taps*Cin."""
    B = z.shape[0]
    K_total = sp['mod_w'].shape[1]

    def kernel(z_ref, c_ref, ew1, eb1, ew2, eb2, w0z, w0c, mw, mb,
               modw, modb, o_ref):
        # condition encoder: Linear -> LReLU -> Linear -> LReLU
        h = jnp.dot(c_ref[...], ew1[...], preferred_element_type=jnp.float32)
        h = _lrelu(h + eb1[...])
        h = jnp.dot(h, ew2[...], preferred_element_type=jnp.float32)
        cond = _lrelu(h + eb2[...])
        # mapping layer 0:  [z, cond] @ W0  ==  z @ W0z + cond @ W0c
        w = (jnp.dot(z_ref[...], w0z[...], preferred_element_type=jnp.float32)
             + jnp.dot(cond, w0c[...], preferred_element_type=jnp.float32)
             + mb[0:1, :])
        w = _lrelu(w)
        # mapping layers 1..7 (weights resident in VMEM, unrolled)
        for l in range(MAP_LAYERS - 1):
            w = jnp.dot(w, mw[l], preferred_element_type=jnp.float32)
            w = _lrelu(w + mb[l + 1:l + 2, :])
        if truncation < 1.0:
            w = truncation * w
        # all per-conv modulation EqualLinears batched into one matmul
        o_ref[...] = (jnp.dot(w, modw[...], preferred_element_type=jnp.float32)
                      + modb[...])

    return pl.pallas_call(
        kernel,
        out_shape=jax.ShapeDtypeStruct((B, K_total), jnp.float32),
    )(z.astype(jnp.float32), c_in.astype(jnp.float32),
      sp['ce_w1'], sp['ce_b1'], sp['ce_w2'], sp['ce_b2'],
      sp['w0z'], sp['w0c'], sp['map_w'], sp['map_b'],
      sp['mod_w'], sp['mod_b'])


# ----------------------------- tap tables ------------------------------------
def _taps_conv3(W):
    # 3x3 'same' conv taps over the flat H*W axis: (flat offset, col-mask id)
    # mask id: 0 none, 1 left column invalid (dx==0), 2 right column invalid (dx==2)
    taps = []
    for dy in range(3):
        for dx in range(3):
            off = (dy - 1) * W + (dx - 1)
            mid = 1 if dx == 0 else (2 if dx == 2 else 0)
            taps.append((off, mid))
    return tuple(taps)


def _taps_up(W):
    # sub-pixel windows (a, b) in {0,1}^2, q = 2a + b (input pixel (i+a, j+b))
    return tuple((a * W + b, 2 if b == 1 else 0)
                 for a in range(2) for b in range(2))


# ------------------- in-kernel styled conv (single MXU matmul) ---------------
def _conv_mxu(x, s_k, w_ref, b_ref, taps, W, N):
    """Modulated conv:  (W * style_tiled) @ im2col(x) + bias.

    x     : (Cin, N) bf16 activation (N = H*W flattened spatial, lane axis)
    s_k   : (1, K) f32 tap-tiled style row (K = T*Cin)
    w_ref : (M, K) f32 weight ref (equalized-lr scale pre-folded)
    b_ref : (M, 1) f32 bias ref
    """
    Cin = x.shape[0]
    T = len(taps)
    w_mod = (w_ref[...] * s_k).astype(jnp.bfloat16)                 # (M, K)
    if T == 1:                                                      # 1x1 conv
        im = x
    else:
        P = W + 2                                                   # >= max |off|
        zpad = jnp.zeros((Cin, P), x.dtype)
        xp = jnp.concatenate([zpad, x, zpad], axis=1)               # (Cin, N+2P)
        col = jax.lax.broadcasted_iota(jnp.int32, (1, N), 1) % W
        left_ok = col >= 1
        right_ok = col <= (W - 2)
        wins = []
        for off, mid in taps:
            win = jax.lax.slice(xp, (0, P + off), (Cin, P + off + N))
            if mid == 1:
                win = jnp.where(left_ok, win, jnp.zeros_like(win))
            elif mid == 2:
                win = jnp.where(right_ok, win, jnp.zeros_like(win))
            wins.append(win)
        im = jnp.concatenate(wins, axis=0)                          # (K, N)
    acc = jnp.dot(w_mod, im, preferred_element_type=jnp.float32)    # (M, N) f32
    return acc + b_ref[...]


# ------------------- fused whole-synthesis Pallas kernel ---------------------
def _build_synth_kernel(meta, const_hw):
    """meta: static-only per-block metadata (no arrays)."""
    H0, W0 = const_hw

    def kernel(*refs):
        styles_ref, out_ref = refs[0], refs[-1]
        it = iter(refs[1:-1])
        const_ref = next(it)

        s_all = styles_ref[...].reshape(1, -1)              # (1, K_total) f32
        x = const_ref[...]                                  # (C0, H0*W0) bf16
        H, W = H0, W0
        rgb = None
        for blk in meta:
            c1w, c1b = next(it), next(it)
            c2w, c2b = next(it), next(it)
            rw, rb = next(it), next(it)
            dts = up = None
            if blk['upsample']:
                dts, up = next(it), next(it)
            N = H * W

            # --- conv1 (3x3, or ConvTranspose 3x3 stride-2 as 4-phase sub-pixel)
            o1, k1 = blk['c1_koff'], blk['c1_k']
            s1 = s_all[:, o1:o1 + k1]
            if blk['upsample']:
                y = _conv_mxu(x, s1, c1w, c1b, _taps_up(W), W, N)   # (4*Cout, N)
                y = _lrelu(y).astype(jnp.bfloat16)
                Cout = blk['c1_cout']
                # depth-to-space via 4 precomputed 0/1 column-scatter matmuls
                xn = jnp.dot(y[0:Cout], dts[0],
                             preferred_element_type=jnp.float32)
                for p in range(1, 4):
                    xn = xn + jnp.dot(y[p * Cout:(p + 1) * Cout], dts[p],
                                      preferred_element_type=jnp.float32)
                x = xn.astype(jnp.bfloat16)                          # (Cout, 4N)
                H, W = 2 * H, 2 * W
                N = H * W
            else:
                y = _conv_mxu(x, s1, c1w, c1b, _taps_conv3(W), W, N)
                x = _lrelu(y).astype(jnp.bfloat16)
            # TODO(synk): NoiseInjection omitted (weight zero-initialized -> exact
            # zero contribution); use pltpu.prng_seed/prng_random_bits if needed.

            # --- conv2 (3x3 same) + LeakyReLU
            o2, k2 = blk['c2_koff'], blk['c2_k']
            s2 = s_all[:, o2:o2 + k2]
            y = _conv_mxu(x, s2, c2w, c2b, _taps_conv3(W), W, N)
            x = _lrelu(y).astype(jnp.bfloat16)

            # --- ToRGB (1x1) fused epilogue + bilinear 2x skip upsample + add
            orr, kr = blk['rgb_koff'], blk['rgb_k']
            sr = s_all[:, orr:orr + kr]
            rgb_i = _conv_mxu(x, sr, rw, rb, ((0, 0),), W, N)        # (3, N) f32
            if rgb is None:
                rgb = rgb_i
            else:
                rgb = jnp.dot(rgb, up[...],
                              preferred_element_type=jnp.float32) + rgb_i

        out_ref[0] = jnp.tanh(rgb)                                   # fused tanh

    return kernel


def _const_spec(shape):
    nd = len(shape)
    return pl.BlockSpec(shape, lambda b, _nd=nd: (0,) * _nd)


def pallas_synthesis(prep, styles_k):
    B, K_total = styles_k.shape
    Hf, Wf = prep['final_hw']
    Nf = Hf * Wf

    args = [styles_k.reshape(B, 1, K_total)]
    in_specs = [pl.BlockSpec((1, 1, K_total), lambda b: (b, 0, 0))]

    def add_shared(a):
        args.append(a)
        in_specs.append(_const_spec(a.shape))

    add_shared(prep['const_flat'])
    meta = []
    for blk in prep['blocks']:
        add_shared(blk['conv1']['w2d']); add_shared(blk['conv1']['bias'])
        add_shared(blk['conv2']['w2d']); add_shared(blk['conv2']['bias'])
        add_shared(blk['to_rgb']['w2d']); add_shared(blk['to_rgb']['bias'])
        if blk['upsample']:
            add_shared(blk['dts']); add_shared(blk['up'])
        meta.append({
            'upsample': blk['upsample'],
            'c1_koff': blk['conv1']['koff'], 'c1_k': blk['conv1']['K'],
            'c1_cout': blk['conv1']['Cout'],
            'c2_koff': blk['conv2']['koff'], 'c2_k': blk['conv2']['K'],
            'rgb_koff': blk['to_rgb']['koff'], 'rgb_k': blk['to_rgb']['K'],
        })

    kernel = _build_synth_kernel(meta, CONST_HW)
    return pl.pallas_call(
        kernel,
        out_shape=jax.ShapeDtypeStruct((B, 3, Nf), jnp.float32),
        grid=(B,),
        in_specs=in_specs,
        out_specs=pl.BlockSpec((1, 3, Nf), lambda b: (b, 0, 0)),
        compiler_params=pltpu.CompilerParams(
            dimension_semantics=("parallel",)),
    )(*args)


# ----------------------------- weight / matrix prep --------------------------
def _conv3_w2d(w, scale):
    """torch Conv2d weight (Cout, Cin, 3, 3) -> (Cout, 9*Cin), K = t*Cin + ci."""
    Cout = w.shape[0]
    Cin = w.shape[1]
    return jnp.transpose(w, (0, 2, 3, 1)).reshape(Cout, 9 * Cin) * scale


def _rgb_w2d(w, scale):
    """torch Conv2d 1x1 weight (3, Cin, 1, 1) -> (3, Cin)."""
    return w[:, :, 0, 0] * scale


def _up_w2d(w, scale):
    """ConvTranspose2d(3,3,stride=2,pad=1,out_pad=1) weight (Cin, Cout, 3, 3)
    -> sub-pixel weight (4*Cout, 4*Cin): row = phase*Cout+co, col = window*Cin+ci.
    Phase p = 2a+b produces output pixel (2i+a, 2j+b) from flipped-kernel taps."""
    Cin, Cout = w.shape[0], w.shape[1]
    G = {0: {0: (1, 1)},
         1: {0: (1, 0), 1: (1, 2)},
         2: {0: (0, 1), 2: (2, 1)},
         3: {0: (0, 0), 1: (0, 2), 2: (2, 0), 3: (2, 2)}}
    rows = []
    for p in range(4):
        blocks = []
        for q in range(4):
            if q in G[p]:
                dy, dx = G[p][q]
                blocks.append(jnp.transpose(w[:, :, 2 - dy, 2 - dx], (1, 0)))
            else:
                blocks.append(jnp.zeros((Cout, Cin), jnp.float32))
        rows.append(jnp.concatenate(blocks, axis=1))
    return jnp.concatenate(rows, axis=0) * scale            # (4*Cout, 4*Cin)


def _dts_matrices(H, W):
    """(4, H*W, 4*H*W) bf16 column-scatter matrices: phase p=2a+b maps the
    (H, W) grid flat index to output flat index (2i+a)*2W + 2j+b."""
    mats = []
    for a in range(2):
        for b in range(2):
            Sh = np.zeros((H, 2 * H), np.float32)
            Sh[np.arange(H), 2 * np.arange(H) + a] = 1.0
            Sw = np.zeros((W, 2 * W), np.float32)
            Sw[np.arange(W), 2 * np.arange(W) + b] = 1.0
            mats.append(np.kron(Sh, Sw))
    return jnp.asarray(np.stack(mats), jnp.bfloat16)


def _bilinear_up_1d(n):
    """(n, 2n) matrix for exact 2x bilinear upsample (align_corners=False)."""
    U = np.zeros((n, 2 * n), np.float32)
    for o in range(2 * n):
        c = (o + 0.5) / 2.0 - 0.5
        c0 = int(np.floor(c))
        frac = c - c0
        i0 = min(max(c0, 0), n - 1)
        i1 = min(max(c0 + 1, 0), n - 1)
        U[i0, o] += 1.0 - frac
        U[i1, o] += frac
    return U


def _bilinear_up_flat(H, W):
    """(H*W, 4*H*W) f32:  rgb_up_flat = rgb_flat @ U  (row-major flat layouts)."""
    return jnp.asarray(np.kron(_bilinear_up_1d(H), _bilinear_up_1d(W)),
                       jnp.float32)


# ----------------------------- parameter init --------------------------------
def init_params(key):
    keys = iter(jax.random.split(key, 256))

    def nrm(shape, s=1.0):
        return s * jax.random.normal(next(keys), shape, jnp.float32)

    p = {}
    # condition encoder: Linear(32,64) -> LReLU -> Linear(64, COND) -> LReLU
    p['ce_w1'] = nrm((32, 64), 0.1)
    p['ce_b1'] = nrm((64,), 0.05)
    p['ce_w2'] = nrm((64, COND), 0.1)
    p['ce_b2'] = nrm((COND,), 0.05)

    # mapping network: 8 x EqualLinear(lr_multiplier=0.01) + LeakyReLU
    mapping = []
    in_dim = LATENT + COND
    for _ in range(MAP_LAYERS):
        mapping.append({'w': nrm((in_dim, STYLE)),
                        'b': jnp.zeros((STYLE,), jnp.float32)})
        in_dim = STYLE
    p['mapping'] = mapping

    # learned constant input (NCHW like the torch parameter)
    p['const'] = nrm((1, CHANNELS[0], CONST_HW[0], CONST_HW[1]))

    def styled(cin, cout, k, upsamp):
        if upsamp:
            cw = nrm((cin, cout, k, k), 0.2)     # ConvTranspose2d weight layout
        else:
            cw = nrm((cout, cin, k, k), 0.2)     # Conv2d weight layout
        return {'conv_w': cw,
                'conv_b': nrm((cout,), 0.1),
                'mod_w': nrm((STYLE, cin)),
                'mod_b': jnp.zeros((cin,), jnp.float32),
                'noise_w': jnp.zeros((1,), jnp.float32),   # NoiseInjection weight
                'ksize': k}

    blocks = []
    in_ch = CHANNELS[0]
    for i in range(N_BLOCKS):
        out_ch = CHANNELS[i]
        upsample = (i > 0)
        blocks.append({
            'upsample': upsample,
            'conv1': styled(in_ch, out_ch, 3, upsample),
            'conv2': styled(out_ch, out_ch, 3, False),
            'to_rgb': styled(out_ch, 3, 1, False),
            'rgb_bias': jnp.zeros((3,), jnp.float32),
        })
        in_ch = out_ch
    p['blocks'] = blocks
    return p, next(keys)


def prepare_params(p):
    """One-time fold of equalized-lr scales, kernel-layout rearrangement, and
    precomputation of depth-to-space / bilinear-upsample matrices."""
    prep = {}
    s0 = (1.0 / math.sqrt(LATENT + COND)) * 0.01
    sl = (1.0 / math.sqrt(STYLE)) * 0.01
    sm = 1.0 / math.sqrt(STYLE)            # modulation EqualLinear scale
    sn = {
        'ce_w1': p['ce_w1'].astype(jnp.float32),
        'ce_b1': p['ce_b1'].reshape(1, -1).astype(jnp.float32),
        'ce_w2': p['ce_w2'].astype(jnp.float32),
        'ce_b2': p['ce_b2'].reshape(1, -1).astype(jnp.float32),
        'w0z': (p['mapping'][0]['w'][:LATENT] * s0).astype(jnp.float32),
        'w0c': (p['mapping'][0]['w'][LATENT:] * s0).astype(jnp.float32),
        'map_w': jnp.stack([p['mapping'][l]['w'] * sl
                            for l in range(1, MAP_LAYERS)]).astype(jnp.float32),
        'map_b': jnp.stack([p['mapping'][l]['b'] * 0.01
                            for l in range(MAP_LAYERS)]).astype(jnp.float32),
    }

    mod_w_cols, mod_b_cols, blocks = [], [], []
    koff = 0
    H, W = CONST_HW
    for bp in p['blocks']:
        blk = {'upsample': bp['upsample']}
        if bp['upsample']:
            # matrices act on the pre-upsample (input) spatial size of this block
            blk['dts'] = _dts_matrices(H, W)        # (4, N, 4N) bf16
            blk['up'] = _bilinear_up_flat(H, W)     # (N, 4N) f32
        for name, mode in (('conv1', 'up' if bp['upsample'] else 'conv3'),
                           ('conv2', 'conv3'), ('to_rgb', 'rgb')):
            cp = bp[name]
            k = cp['ksize']
            if mode == 'up':
                Cin, Cout = cp['conv_w'].shape[0], cp['conv_w'].shape[1]
            else:
                Cout, Cin = cp['conv_w'].shape[0], cp['conv_w'].shape[1]
            scale = 1.0 / math.sqrt(Cin * k * k)
            if mode == 'up':
                w2d, T, nph = _up_w2d(cp['conv_w'], scale), 4, 4
            elif mode == 'conv3':
                w2d, T, nph = _conv3_w2d(cp['conv_w'], scale), 9, 1
            else:
                w2d, T, nph = _rgb_w2d(cp['conv_w'], scale), 1, 1
            bias = cp['conv_b'] * scale          # reference: (conv + bias) * scale
            if name == 'to_rgb':
                bias = bias + bp['rgb_bias']     # rgb bias added unscaled
            if nph > 1:
                bias = jnp.tile(bias, (nph,))
            K = T * Cin
            blk[name] = {'w2d': w2d.astype(jnp.float32),
                         'bias': bias.reshape(-1, 1).astype(jnp.float32),
                         'koff': koff, 'K': K, 'Cin': Cin, 'Cout': Cout, 'T': T}
            # modulation EqualLinear columns, pre-tiled tap-major to match w2d
            mod_w_cols.append(jnp.tile(cp['mod_w'] * sm, (1, T)))
            mod_b_cols.append(jnp.tile(cp['mod_b'], (T,)))
            koff += K
        if bp['upsample']:
            H, W = 2 * H, 2 * W
        blocks.append(blk)

    sn['mod_w'] = jnp.concatenate(mod_w_cols, axis=1).astype(jnp.float32)
    sn['mod_b'] = jnp.concatenate(mod_b_cols).reshape(1, -1).astype(jnp.float32)
    prep['style_net'] = sn
    prep['blocks'] = blocks
    prep['k_total'] = koff
    prep['const_flat'] = p['const'].reshape(
        CHANNELS[0], CONST_HW[0] * CONST_HW[1]).astype(jnp.bfloat16)
    prep['final_hw'] = (H, W)
    return prep


# ----------------------------- generator forward ----------------------------
def generator_forward(prep, z, weather, lighting, layout, truncation=1.0):
    B = z.shape[0]
    assert weather is not None and lighting is not None and layout is not None

    c_in = jnp.concatenate([weather, lighting, layout], axis=1)        # (B, 32)
    styles_k = pallas_styles(z, c_in, prep['style_net'], truncation)   # (B, K_total)
    img = pallas_synthesis(prep, styles_k)                             # (B, 3, Hf*Wf)

    Hf, Wf = prep['final_hw']
    img = img.reshape(B, 3, Hf, Wf)                                    # NCHW
    if (Hf, Wf) != TARGET:        # not triggered at this scaled config
        img = jax.image.resize(img, (B, 3, TARGET[0], TARGET[1]),
                               method='bilinear')
    return img


# ----------------------------- main ------------------------------------------
if __name__ == "__main__":
    key = jax.random.PRNGKey(0)
    params, key = init_params(key)
    prep = prepare_params(params)

    key, kz, kw, kl, ky = jax.random.split(key, 5)
    B = 2
    z = jax.random.normal(kz, (B, LATENT), jnp.float32)
    weather = jax.random.normal(kw, (B, 8), jnp.float32)
    lighting = jax.random.normal(kl, (B, 8), jnp.float32)
    layout = jax.random.normal(ky, (B, 16), jnp.float32)

    out = generator_forward(prep, z, weather, lighting, layout)
    out = jax.block_until_ready(out)

    assert out.shape == (B, 3, TARGET[0], TARGET[1]), out.shape
    assert bool(jnp.all(jnp.isfinite(out)))
    print("KERNEL_OK")
</pallas_src>

<mosaic_0001>
module attributes {stable_mosaic.version = 11 : i64} {
  func.func @kernel(%arg0: memref<2x32xf32, #tpu.memory_space<vmem>>, %arg1: memref<2x32xf32, #tpu.memory_space<vmem>>, %arg2: memref<32x64xf32, #tpu.memory_space<vmem>>, %arg3: memref<1x64xf32, #tpu.memory_space<vmem>>, %arg4: memref<64x16xf32, #tpu.memory_space<vmem>>, %arg5: memref<1x16xf32, #tpu.memory_space<vmem>>, %arg6: memref<32x32xf32, #tpu.memory_space<vmem>>, %arg7: memref<16x32xf32, #tpu.memory_space<vmem>>, %arg8: memref<7x32x32xf32, #tpu.memory_space<vmem>>, %arg9: memref<8x32xf32, #tpu.memory_space<vmem>>, %arg10: memref<32x1040xf32, #tpu.memory_space<vmem>>, %arg11: memref<1x1040xf32, #tpu.memory_space<vmem>>, %arg12: memref<2x1040xf32, #tpu.memory_space<vmem>>) attributes {dimension_semantics = [], scalar_prefetch = 0 : i64, scratch_operands = 0 : i64, tpu.core_type = #tpu.core_type<tc>} {
    %c0 = arith.constant 0 : index
    %c0_0 = arith.constant 0 : index
    %0 = vector.load %arg1[%c0, %c0_0] : memref<2x32xf32, #tpu.memory_space<vmem>>, vector<2x32xf32>
    %c0_1 = arith.constant 0 : index
    %c0_2 = arith.constant 0 : index
    %1 = vector.load %arg2[%c0_1, %c0_2] : memref<32x64xf32, #tpu.memory_space<vmem>>, vector<32x64xf32>
    %cst = arith.constant dense<0.000000e+00> : vector<2x64xf32>
    %2 = tpu.matmul %0, %1, %cst {dimension_numbers = #tpu.dot_dimension_numbers<[1], [0], [0], [1], [0, 0, 1, 1], [], []>} : vector<2x32xf32>, vector<32x64xf32>, vector<2x64xf32> -> vector<2x64xf32>
    %c0_3 = arith.constant 0 : index
    %c0_4 = arith.constant 0 : index
    %3 = vector.load %arg3[%c0_3, %c0_4] : memref<1x64xf32, #tpu.memory_space<vmem>>, vector<1x64xf32>
    %4 = vector.broadcast %3 : vector<1x64xf32> to vector<2x64xf32>
    %5 = arith.addf %2, %4 : vector<2x64xf32>
    %cst_5 = arith.constant 0.000000e+00 : f32
    %6 = vector.broadcast %cst_5 : f32 to vector<2x64xf32>
    %7 = arith.cmpf oge, %5, %6 : vector<2x64xf32>
    %cst_6 = arith.constant 2.000000e-01 : f32
    %8 = vector.broadcast %cst_6 : f32 to vector<2x64xf32>
    %9 = arith.mulf %8, %5 : vector<2x64xf32>
    %10 = arith.select %7, %5, %9 : vector<2x64xi1>, vector<2x64xf32>
    %c0_7 = arith.constant 0 : index
    %c0_8 = arith.constant 0 : index
    %11 = vector.load %arg4[%c0_7, %c0_8] : memref<64x16xf32, #tpu.memory_space<vmem>>, vector<64x16xf32>
    %cst_9 = arith.constant dense<0.000000e+00> : vector<2x16xf32>
    %12 = tpu.matmul %10, %11, %cst_9 {dimension_numbers = #tpu.dot_dimension_numbers<[1], [0], [0], [1], [0, 0, 1, 1], [], []>} : vector<2x64xf32>, vector<64x16xf32>, vector<2x16xf32> -> vector<2x16xf32>
    %c0_10 = arith.constant 0 : index
    %c0_11 = arith.constant 0 : index
    %13 = vector.load %arg5[%c0_10, %c0_11] : memref<1x16xf32, #tpu.memory_space<vmem>>, vector<1x16xf32>
    %14 = vector.broadcast %13 : vector<1x16xf32> to vector<2x16xf32>
    %15 = arith.addf %12, %14 : vector<2x16xf32>
    %cst_12 = arith.constant 0.000000e+00 : f32
    %16 = vector.broadcast %cst_12 : f32 to vector<2x16xf32>
    %17 = arith.cmpf oge, %15, %16 : vector<2x16xf32>
    %cst_13 = arith.constant 2.000000e-01 : f32
    %18 = vector.broadcast %cst_13 : f32 to vector<2x16xf32>
    %19 = arith.mulf %18, %15 : vector<2x16xf32>
    %20 = arith.select %17, %15, %19 : vector<2x16xi1>, vector<2x16xf32>
    %c0_14 = arith.constant 0 : index
    %c0_15 = arith.constant 0 : index
    %21 = vector.load %arg0[%c0_14, %c0_15] : memref<2x32xf32, #tpu.memory_space<vmem>>, vector<2x32xf32>
    %c0_16 = arith.constant 0 : index
    %c0_17 = arith.constant 0 : index
    %22 = vector.load %arg6[%c0_16, %c0_17] : memref<32x32xf32, #tpu.memory_space<vmem>>, vector<32x32xf32>
    %cst_18 = arith.constant dense<0.000000e+00> : vector<2x32xf32>
    %23 = tpu.matmul %21, %22, %cst_18 {dimension_numbers = #tpu.dot_dimension_numbers<[1], [0], [0], [1], [0, 0, 1, 1], [], []>} : vector<2x32xf32>, vector<32x32xf32>, vector<2x32xf32> -> vector<2x32xf32>
    %c0_19 = arith.constant 0 : index
    %c0_20 = arith.constant 0 : index
    %24 = vector.load %arg7[%c0_19, %c0_20] : memref<16x32xf32, #tpu.memory_space<vmem>>, vector<16x32xf32>
    %cst_21 = arith.constant dense<0.000000e+00> : vector<2x32xf32>
    %25 = tpu.matmul %20, %24, %cst_21 {dimension_numbers = #tpu.dot_dimension_numbers<[1], [0], [0], [1], [0, 0, 1, 1], [], []>} : vector<2x16xf32>, vector<16x32xf32>, vector<2x32xf32> -> vector<2x32xf32>
    %26 = arith.addf %23, %25 : vector<2x32xf32>
    %c0_22 = arith.constant 0 : index
    %c0_23 = arith.constant 0 : index
    %27 = vector.load %arg9[%c0_22, %c0_23] : memref<8x32xf32, #tpu.memory_space<vmem>>, vector<1x32xf32>
    %28 = vector.broadcast %27 : vector<1x32xf32> to vector<2x32xf32>
    %29 = arith.addf %26, %28 : vector<2x32xf32>
    %cst_24 = arith.constant 0.000000e+00 : f32
    %30 = vector.broadcast %cst_24 : f32 to vector<2x32xf32>
    %31 = arith.cmpf oge, %29, %30 : vector<2x32xf32>
    %cst_25 = arith.constant 2.000000e-01 : f32
    %32 = vector.broadcast %cst_25 : f32 to vector<2x32xf32>
    %33 = arith.mulf %32, %29 : vector<2x32xf32>
    %34 = arith.select %31, %29, %33 : vector<2x32xi1>, vector<2x32xf32>
    %c0_26 = arith.constant 0 : index
    %c0_27 = arith.constant 0 : index
    %c0_28 = arith.constant 0 : index
    %35 = vector.load %arg8[%c0_26, %c0_27, %c0_28] : memref<7x32x32xf32, #tpu.memory_space<vmem>>, vector<1x32x32xf32>
    %36 = vector.shape_cast %35 : vector<1x32x32xf32> to vector<32x32xf32>
    %cst_29 = arith.constant dense<0.000000e+00> : vector<2x32xf32>
    %37 = tpu.matmul %34, %36, %cst_29 {dimension_numbers = #tpu.dot_dimension_numbers<[1], [0], [0], [1], [0, 0, 1, 1], [], []>} : vector<2x32xf32>, vector<32x32xf32>, vector<2x32xf32> -> vector<2x32xf32>
    %c1 = arith.constant 1 : index
    %c0_30 = arith.constant 0 : index
    %38 = vector.load %arg9[%c1, %c0_30] : memref<8x32xf32, #tpu.memory_space<vmem>>, vector<1x32xf32>
    %39 = vector.broadcast %38 : vector<1x32xf32> to vector<2x32xf32>
    %40 = arith.addf %37, %39 : vector<2x32xf32>
    %cst_31 = arith.constant 0.000000e+00 : f32
    %41 = vector.broadcast %cst_31 : f32 to vector<2x32xf32>
    %42 = arith.cmpf oge, %40, %41 : vector<2x32xf32>
    %cst_32 = arith.constant 2.000000e-01 : f32
    %43 = vector.broadcast %cst_32 : f32 to vector<2x32xf32>
    %44 = arith.mulf %43, %40 : vector<2x32xf32>
    %45 = arith.select %42, %40, %44 : vector<2x32xi1>, vector<2x32xf32>
    %c1_33 = arith.constant 1 : index
    %c0_34 = arith.constant 0 : index
    %c0_35 = arith.constant 0 : index
    %46 = vector.load %arg8[%c1_33, %c0_34, %c0_35] : memref<7x32x32xf32, #tpu.memory_space<vmem>>, vector<1x32x32xf32>
    %47 = vector.shape_cast %46 : vector<1x32x32xf32> to vector<32x32xf32>
    %cst_36 = arith.constant dense<0.000000e+00> : vector<2x32xf32>
    %48 = tpu.matmul %45, %47, %cst_36 {dimension_numbers = #tpu.dot_dimension_numbers<[1], [0], [0], [1], [0, 0, 1, 1], [], []>} : vector<2x32xf32>, vector<32x32xf32>, vector<2x32xf32> -> vector<2x32xf32>
    %c2 = arith.constant 2 : index
    %c0_37 = arith.constant 0 : index
    %49 = vector.load %arg9[%c2, %c0_37] : memref<8x32xf32, #tpu.memory_space<vmem>>, vector<1x32xf32>
    %50 = vector.broadcast %49 : vector<1x32xf32> to vector<2x32xf32>
    %51 = arith.addf %48, %50 : vector<2x32xf32>
    %cst_38 = arith.constant 0.000000e+00 : f32
    %52 = vector.broadcast %cst_38 : f32 to vector<2x32xf32>
    %53 = arith.cmpf oge, %51, %52 : vector<2x32xf32>
    %cst_39 = arith.constant 2.000000e-01 : f32
    %54 = vector.broadcast %cst_39 : f32 to vector<2x32xf32>
    %55 = arith.mulf %54, %51 : vector<2x32xf32>
    %56 = arith.select %53, %51, %55 : vector<2x32xi1>, vector<2x32xf32>
    %c2_40 = arith.constant 2 : index
    %c0_41 = arith.constant 0 : index
    %c0_42 = arith.constant 0 : index
    %57 = vector.load %arg8[%c2_40, %c0_41, %c0_42] : memref<7x32x32xf32, #tpu.memory_space<vmem>>, vector<1x32x32xf32>
    %58 = vector.shape_cast %57 : vector<1x32x32xf32> to vector<32x32xf32>
    %cst_43 = arith.constant dense<0.000000e+00> : vector<2x32xf32>
    %59 = tpu.matmul %56, %58, %cst_43 {dimension_numbers = #tpu.dot_dimension_numbers<[1], [0], [0], [1], [0, 0, 1, 1], [], []>} : vector<2x32xf32>, vector<32x32xf32>, vector<2x32xf32> -> vector<2x32xf32>
    %c3 = arith.constant 3 : index
    %c0_44 = arith.constant 0 : index
    %60 = vector.load %arg9[%c3, %c0_44] : memref<8x32xf32, #tpu.memory_space<vmem>>, vector<1x32xf32>
    %61 = vector.broadcast %60 : vector<1x32xf32> to vector<2x32xf32>
    %62 = arith.addf %59, %61 : vector<2x32xf32>
    %cst_45 = arith.constant 0.000000e+00 : f32
    %63 = vector.broadcast %cst_45 : f32 to vector<2x32xf32>
    %64 = arith.cmpf oge, %62, %63 : vector<2x32xf32>
    %cst_46 = arith.constant 2.000000e-01 : f32
    %65 = vector.broadcast %cst_46 : f32 to vector<2x32xf32>
    %66 = arith.mulf %65, %62 : vector<2x32xf32>
    %67 = arith.select %64, %62, %66 : vector<2x32xi1>, vector<2x32xf32>
    %c3_47 = arith.constant 3 : index
    %c0_48 = arith.constant 0 : index
    %c0_49 = arith.constant 0 : index
    %68 = vector.load %arg8[%c3_47, %c0_48, %c0_49] : memref<7x32x32xf32, #tpu.memory_space<vmem>>, vector<1x32x32xf32>
    %69 = vector.shape_cast %68 : vector<1x32x32xf32> to vector<32x32xf32>
    %cst_50 = arith.constant dense<0.000000e+00> : vector<2x32xf32>
    %70 = tpu.matmul %67, %69, %cst_50 {dimension_numbers = #tpu.dot_dimension_numbers<[1], [0], [0], [1], [0, 0, 1, 1], [], []>} : vector<2x32xf32>, vector<32x32xf32>, vector<2x32xf32> -> vector<2x32xf32>
    %c4 = arith.constant 4 : index
    %c0_51 = arith.constant 0 : index
    %71 = vector.load %arg9[%c4, %c0_51] : memref<8x32xf32, #tpu.memory_space<vmem>>, vector<1x32xf32>
    %72 = vector.broadcast %71 : vector<1x32xf32> to vector<2x32xf32>
    %73 = arith.addf %70, %72 : vector<2x32xf32>
    %cst_52 = arith.constant 0.000000e+00 : f32
    %74 = vector.broadcast %cst_52 : f32 to vector<2x32xf32>
    %75 = arith.cmpf oge, %73, %74 : vector<2x32xf32>
    %cst_53 = arith.constant 2.000000e-01 : f32
    %76 = vector.broadcast %cst_53 : f32 to vector<2x32xf32>
    %77 = arith.mulf %76, %73 : vector<2x32xf32>
    %78 = arith.select %75, %73, %77 : vector<2x32xi1>, vector<2x32xf32>
    %c4_54 = arith.constant 4 : index
    %c0_55 = arith.constant 0 : index
    %c0_56 = arith.constant 0 : index
    %79 = vector.load %arg8[%c4_54, %c0_55, %c0_56] : memref<7x32x32xf32, #tpu.memory_space<vmem>>, vector<1x32x32xf32>
    %80 = vector.shape_cast %79 : vector<1x32x32xf32> to vector<32x32xf32>
    %cst_57 = arith.constant dense<0.000000e+00> : vector<2x32xf32>
    %81 = tpu.matmul %78, %80, %cst_57 {dimension_numbers = #tpu.dot_dimension_numbers<[1], [0], [0], [1], [0, 0, 1, 1], [], []>} : vector<2x32xf32>, vector<32x32xf32>, vector<2x32xf32> -> vector<2x32xf32>
    %c5 = arith.constant 5 : index
    %c0_58 = arith.constant 0 : index
    %82 = vector.load %arg9[%c5, %c0_58] : memref<8x32xf32, #tpu.memory_space<vmem>>, vector<1x32xf32>
    %83 = vector.broadcast %82 : vector<1x32xf32> to vector<2x32xf32>
    %84 = arith.addf %81, %83 : vector<2x32xf32>
    %cst_59 = arith.constant 0.000000e+00 : f32
    %85 = vector.broadcast %cst_59 : f32 to vector<2x32xf32>
    %86 = arith.cmpf oge, %84, %85 : vector<2x32xf32>
    %cst_60 = arith.constant 2.000000e-01 : f32
    %87 = vector.broadcast %cst_60 : f32 to vector<2x32xf32>
    %88 = arith.mulf %87, %84 : vector<2x32xf32>
    %89 = arith.select %86, %84, %88 : vector<2x32xi1>, vector<2x32xf32>
    %c5_61 = arith.constant 5 : index
    %c0_62 = arith.constant 0 : index
    %c0_63 = arith.constant 0 : index
    %90 = vector.load %arg8[%c5_61, %c0_62, %c0_63] : memref<7x32x32xf32, #tpu.memory_space<vmem>>, vector<1x32x32xf32>
    %91 = vector.shape_cast %90 : vector<1x32x32xf32> to vector<32x32xf32>
    %cst_64 = arith.constant dense<0.000000e+00> : vector<2x32xf32>
    %92 = tpu.matmul %89, %91, %cst_64 {dimension_numbers = #tpu.dot_dimension_numbers<[1], [0], [0], [1], [0, 0, 1, 1], [], []>} : vector<2x32xf32>, vector<32x32xf32>, vector<2x32xf32> -> vector<2x32xf32>
    %c6 = arith.constant 6 : index
    %c0_65 = arith.constant 0 : index
    %93 = vector.load %arg9[%c6, %c0_65] : memref<8x32xf32, #tpu.memory_space<vmem>>, vector<1x32xf32>
    %94 = vector.broadcast %93 : vector<1x32xf32> to vector<2x32xf32>
    %95 = arith.addf %92, %94 : vector<2x32xf32>
    %cst_66 = arith.constant 0.000000e+00 : f32
    %96 = vector.broadcast %cst_66 : f32 to vector<2x32xf32>
    %97 = arith.cmpf oge, %95, %96 : vector<2x32xf32>
    %cst_67 = arith.constant 2.000000e-01 : f32
    %98 = vector.broadcast %cst_67 : f32 to vector<2x32xf32>
    %99 = arith.mulf %98, %95 : vector<2x32xf32>
    %100 = arith.select %97, %95, %99 : vector<2x32xi1>, vector<2x32xf32>
    %c6_68 = arith.constant 6 : index
    %c0_69 = arith.constant 0 : index
    %c0_70 = arith.constant 0 : index
    %101 = vector.load %arg8[%c6_68, %c0_69, %c0_70] : memref<7x32x32xf32, #tpu.memory_space<vmem>>, vector<1x32x32xf32>
    %102 = vector.shape_cast %101 : vector<1x32x32xf32> to vector<32x32xf32>
    %cst_71 = arith.constant dense<0.000000e+00> : vector<2x32xf32>
    %103 = tpu.matmul %100, %102, %cst_71 {dimension_numbers = #tpu.dot_dimension_numbers<[1], [0], [0], [1], [0, 0, 1, 1], [], []>} : vector<2x32xf32>, vector<32x32xf32>, vector<2x32xf32> -> vector<2x32xf32>
    %c7 = arith.constant 7 : index
    %c0_72 = arith.constant 0 : index
    %104 = vector.load %arg9[%c7, %c0_72] : memref<8x32xf32, #tpu.memory_space<vmem>>, vector<1x32xf32>
    %105 = vector.broadcast %104 : vector<1x32xf32> to vector<2x32xf32>
    %106 = arith.addf %103, %105 : vector<2x32xf32>
    %cst_73 = arith.constant 0.000000e+00 : f32
    %107 = vector.broadcast %cst_73 : f32 to vector<2x32xf32>
    %108 = arith.cmpf oge, %106, %107 : vector<2x32xf32>
    %cst_74 = arith.constant 2.000000e-01 : f32
    %109 = vector.broadcast %cst_74 : f32 to vector<2x32xf32>
    %110 = arith.mulf %109, %106 : vector<2x32xf32>
    %111 = arith.select %108, %106, %110 : vector<2x32xi1>, vector<2x32xf32>
    %c0_75 = arith.constant 0 : index
    %c0_76 = arith.constant 0 : index
    %112 = vector.load %arg10[%c0_75, %c0_76] : memref<32x1040xf32, #tpu.memory_space<vmem>>, vector<32x1040xf32>
    %cst_77 = arith.constant dense<0.000000e+00> : vector<2x1040xf32>
    %113 = tpu.matmul %111, %112, %cst_77 {dimension_numbers = #tpu.dot_dimension_numbers<[1], [0], [0], [1], [0, 0, 1, 1], [], []>} : vector<2x32xf32>, vector<32x1040xf32>, vector<2x1040xf32> -> vector<2x1040xf32>
    %c0_78 = arith.constant 0 : index
    %c0_79 = arith.constant 0 : index
    %114 = vector.load %arg11[%c0_78, %c0_79] : memref<1x1040xf32, #tpu.memory_space<vmem>>, vector<1x1040xf32>
    %115 = vector.broadcast %114 : vector<1x1040xf32> to vector<2x1040xf32>
    %116 = arith.addf %113, %115 : vector<2x1040xf32>
    %c0_80 = arith.constant 0 : index
    %c0_81 = arith.constant 0 : index
    %117 = vector.load %arg12[%c0_80, %c0_81] : memref<2x1040xf32, #tpu.memory_space<vmem>>, vector<2x1040xf32>
    tpu.vector_store %arg12[%c0_80, %c0_81], %116 {strides = array<i32>} : memref<2x1040xf32, #tpu.memory_space<vmem>>, vector<2x1040xf32>,
    return
  }
}

</mosaic_0001>

<llo_original>
// kernel: tpu_custom_call.1
$region0: #{tpu_custom_call.1}
  #allocation0 [shape = 'u32[]', space=smem, size = 0x4, offset = 0x4, fixed_abs, tag = 'smem constant byte address 0x4 - core index']
  #allocation1 [shape = 'u32[144,128]{1,0:T(1,128)}', space=vmem, size = 0x12000, scoped, tag = 'internal scratch']
  %s0 = inlined_call_operand.hbm [shape: f32[2,32], index: 0, kind: input, shape index: {}]
  %s1 = inlined_call_operand.hbm [shape: f32[2,32], index: 1, kind: input, shape index: {}]
  %s2 = inlined_call_operand.vmem [shape: f32[32,64], index: 2, kind: input, shape index: {}]
  %s3 = inlined_call_operand.hbm [shape: f32[1,64], index: 3, kind: input, shape index: {}]
  %s4 = inlined_call_operand.vmem [shape: f32[64,16], index: 4, kind: input, shape index: {}]
  %s5 = inlined_call_operand.hbm [shape: f32[1,16], index: 5, kind: input, shape index: {}]
  %s6 = inlined_call_operand.vmem [shape: f32[32,32], index: 6, kind: input, shape index: {}]
  %s7 = inlined_call_operand.vmem [shape: f32[16,32], index: 7, kind: input, shape index: {}]
  %s8 = inlined_call_operand.hbm [shape: f32[7,32,32], index: 8, kind: input, shape index: {}]
  %s9 = inlined_call_operand.hbm [shape: f32[8,32], index: 9, kind: input, shape index: {}]
  %s10 = inlined_call_operand.hbm [shape: f32[32,1040], index: 10, kind: input, shape index: {}]
  %s11 = inlined_call_operand.vmem [shape: f32[1,1040], index: 11, kind: input, shape index: {}]
  %s12 = inlined_call_operand.hbm [shape: f32[2,1040], index: 12, kind: output, shape index: {}]
  %s13 = sld [smem:[#allocation0]]
  $region86: #{tpu_custom_call.1} parent=0
    _
  %s15 = ssub.s32 1, %s13
  %s16 = scalar_select 0, %s15, %s13
  $region1: #{tpu_custom_call.1} parent=0
    #allocation2 [shape = 'u8[1024]{0}', space=vmem, size = 0x400, scoped, tag = 'input window, operand 0, single buffered']
    #allocation3 [shape = 's32[1]{0}', space=sflag, size = 0x4, scoped, tag = 'scoped memory for tpu_custom_call.1']
    #allocation4 [shape = 's32[1]{0}', space=sflag, size = 0x4, scoped, tag = 'scoped memory for tpu_custom_call.1']
    #allocation5 [shape = 'u8[1024]{0}', space=vmem, size = 0x400, scoped, tag = 'input window, operand 1, single buffered']
    #allocation6 [shape = 's32[1]{0}', space=sflag, size = 0x4, scoped, tag = 'scoped memory for tpu_custom_call.1']
    #allocation7 [shape = 'u8[512]{0}', space=vmem, size = 0x400, scoped, tag = 'input window, operand 3, single buffered']
    #allocation8 [shape = 'u8[512]{0}', space=vmem, size = 0x400, scoped, tag = 'input window, operand 5, single buffered']
    #allocation9 [shape = 's32[1]{0}', space=sflag, size = 0x4, scoped, tag = 'scoped memory for tpu_custom_call.1']
    #allocation10 [shape = 'u8[114688]{0}', space=vmem, size = 0x1c000, scoped, tag = 'input window, operand 8, single buffered']
    #allocation11 [shape = 'u8[4096]{0}', space=vmem, size = 0x1000, scoped, tag = 'input window, operand 9, single buffered']
    #allocation12 [shape = 's32[1]{0}', space=sflag, size = 0x4, scoped, tag = 'scoped memory for tpu_custom_call.1']
    #allocation13 [shape = 'u8[147456]{0}', space=vmem, size = 0x24000, scoped, tag = 'input window, operand 10, single buffered']
    #allocation14 [shape = 'u8[9216]{0}', space=vmem, size = 0x2400, scoped, tag = 'output window, operand 0, single buffered']
    %17 = vsyncpa [#allocation3], 0
    %18 = vsyncpa [#allocation6], 0
    %19 = vsyncpa [#allocation9], 0
    %20 = vsyncpa [#allocation12], 0
    %21 = vsyncpa [#allocation4], 0
    // Predicated region
    $region2: #{tpu_custom_call.1} parent=1 // pred_check
      _
    $region3: #{tpu_custom_call.1} parent=1 // pred_check_branch
      %23 = sbr.rel (0) target = $region5
    $region4: #{tpu_custom_call.1} parent=1 // pred_region
      %s25 = ssub.s32 32, 32
      %26 = vsyncadd [#allocation3], %s25
      %s28 = sshll.u32 [#allocation2], 4
      %s29 = int_to_ptr.vmem [resolvable:$true] %s28
      %31 = dma.hbm_to_vmem [thread:$0]  %s0, 32, %s29, [#allocation3]
    $region5: #{tpu_custom_call.1} parent=1 // pred_fallthru
      _
    // Predicated region
    $region6: #{tpu_custom_call.1} parent=1 // pred_check
      _
    $region7: #{tpu_custom_call.1} parent=1 // pred_check_branch
      %33 = sbr.rel (0) target = $region9
    $region8: #{tpu_custom_call.1} parent=1 // pred_region
      %s35 = ssub.s32 32, 32
      %36 = vsyncadd [#allocation6], %s35
      %s38 = sshll.u32 [#allocation5], 4
      %s39 = int_to_ptr.vmem [resolvable:$true] %s38
      %41 = dma.hbm_to_vmem [thread:$0]  %s1, 32, %s39, [#allocation6]
    $region9: #{tpu_custom_call.1} parent=1 // pred_fallthru
      _
    // Predicated region
    $region10: #{tpu_custom_call.1} parent=1 // pred_check
      _
    $region11: #{tpu_custom_call.1} parent=1 // pred_check_branch
      %43 = sbr.rel (0) target = $region13
    $region12: #{tpu_custom_call.1} parent=1 // pred_region
      _
    $region13: #{tpu_custom_call.1} parent=1 // pred_fallthru
      _
    // Predicated region
    $region14: #{tpu_custom_call.1} parent=1 // pred_check
      _
    $region15: #{tpu_custom_call.1} parent=1 // pred_check_branch
      %45 = sbr.rel (0) target = $region17
    $region16: #{tpu_custom_call.1} parent=1 // pred_region
      %s47 = ssub.s32 16, 16
      %48 = vsyncadd [#allocation6], %s47
      %s50 = sshll.u32 [#allocation7], 4
      %s51 = int_to_ptr.vmem [resolvable:$true] %s50
      %53 = dma.hbm_to_vmem [thread:$0]  %s3, 16, %s51, [#allocation6]
    $region17: #{tpu_custom_call.1} parent=1 // pred_fallthru
      _
    // Predicated region
    $region18: #{tpu_custom_call.1} parent=1 // pred_check
      _
    $region19: #{tpu_custom_call.1} parent=1 // pred_check_branch
      %55 = sbr.rel (0) target = $region21
    $region20: #{tpu_custom_call.1} parent=1 // pred_region
      _
    $region21: #{tpu_custom_call.1} parent=1 // pred_fallthru
      _
    // Predicated region
    $region22: #{tpu_custom_call.1} parent=1 // pred_check
      _
    $region23: #{tpu_custom_call.1} parent=1 // pred_check_branch
      %57 = sbr.rel (0) target = $region25
    $region24: #{tpu_custom_call.1} parent=1 // pred_region
      %s59 = ssub.s32 16, 16
      %60 = vsyncadd [#allocation9], %s59
      %s62 = sshll.u32 [#allocation8], 4
      %s63 = int_to_ptr.vmem [resolvable:$true] %s62
      %65 = dma.hbm_to_vmem [thread:$0]  %s5, 16, %s63, [#allocation9]
    $region25: #{tpu_custom_call.1} parent=1 // pred_fallthru
      _
    // Predicated region
    $region26: #{tpu_custom_call.1} parent=1 // pred_check
      _
    $region27: #{tpu_custom_call.1} parent=1 // pred_check_branch
      %67 = sbr.rel (0) target = $region29
    $region28: #{tpu_custom_call.1} parent=1 // pred_region
      _
    $region29: #{tpu_custom_call.1} parent=1 // pred_fallthru
      _
    // Predicated region
    $region30: #{tpu_custom_call.1} parent=1 // pred_check
      _
    $region31: #{tpu_custom_call.1} parent=1 // pred_check_branch
      %69 = sbr.rel (0) target = $region33
    $region32: #{tpu_custom_call.1} parent=1 // pred_region
      _
    $region33: #{tpu_custom_call.1} parent=1 // pred_fallthru
      _
    // Predicated region
    $region34: #{tpu_custom_call.1} parent=1 // pred_check
      _
    $region35: #{tpu_custom_call.1} parent=1 // pred_check_branch
      %71 = sbr.rel (0) target = $region37
    $region36: #{tpu_custom_call.1} parent=1 // pred_region
      %s73 = ssub.s32 3584, 3584
      %74 = vsyncadd [#allocation9], %s73
      %s75 = sshll.u32 [#allocation10], 4
      %s76 = int_to_ptr.vmem [resolvable:$true] %s75
      %81 = dma.hbm_to_vmem [thread:$0]  %s8, 3584, %s76, [#allocation9], 128, 128, 8
    $region37: #{tpu_custom_call.1} parent=1 // pred_fallthru
      _
    // Predicated region
    $region38: #{tpu_custom_call.1} parent=1 // pred_check
      _
    $region39: #{tpu_custom_call.1} parent=1 // pred_check_branch
      %83 = sbr.rel (0) target = $region41
    $region40: #{tpu_custom_call.1} parent=1 // pred_region
      %s85 = ssub.s32 128, 128
      %86 = vsyncadd [#allocation12], %s85
      %s88 = sshll.u32 [#allocation11], 4
      %s89 = int_to_ptr.vmem [resolvable:$true] %s88
      %91 = dma.hbm_to_vmem [thread:$0]  %s9, 128, %s89, [#allocation12]
    $region41: #{tpu_custom_call.1} parent=1 // pred_fallthru
      _
    // Predicated region
    $region42: #{tpu_custom_call.1} parent=1 // pred_check
      _
    $region43: #{tpu_custom_call.1} parent=1 // pred_check_branch
      %93 = sbr.rel (0) target = $region45
    $region44: #{tpu_custom_call.1} parent=1 // pred_region
      %s95 = ssub.s32 4608, 4608
      %96 = vsyncadd [#allocation12], %s95
      %s97 = sshll.u32 [#allocation13], 4
      %s98 = int_to_ptr.vmem [resolvable:$true] %s97
      %103 = dma.hbm_to_vmem [thread:$0]  %s10, 4608, %s98, [#allocation12], 1152, 1152, 72
    $region45: #{tpu_custom_call.1} parent=1 // pred_fallthru
      _
    // Predicated region
    $region46: #{tpu_custom_call.1} parent=1 // pred_check
      _
    $region47: #{tpu_custom_call.1} parent=1 // pred_check_branch
      %105 = sbr.rel (0) target = $region49
    $region48: #{tpu_custom_call.1} parent=1 // pred_region
      _
    $region49: #{tpu_custom_call.1} parent=1 // pred_fallthru
      _
    // Predicated region
    $region50: #{tpu_custom_call.1} parent=1 // pred_check
      _
    $region51: #{tpu_custom_call.1} parent=1 // pred_check_branch
      %107 = sbr.rel (0) target = $region53
    $region52: #{tpu_custom_call.1} parent=1 // pred_region
      %108 = dma.done [#allocation3], 32
    $region53: #{tpu_custom_call.1} parent=1 // pred_fallthru
      _
    // Predicated region
    $region54: #{tpu_custom_call.1} parent=1 // pred_check
      _
    $region55: #{tpu_custom_call.1} parent=1 // pred_check_branch
      %110 = sbr.rel (0) target = $region57
    $region56: #{tpu_custom_call.1} parent=1 // pred_region
      %111 = dma.done [#allocation6], 32
    $region57: #{tpu_custom_call.1} parent=1 // pred_fallthru
      _
    // Predicated region
    $region58: #{tpu_custom_call.1} parent=1 // pred_check
      _
    $region59: #{tpu_custom_call.1} parent=1 // pred_check_branch
      %113 = sbr.rel (0) target = $region61
    $region60: #{tpu_custom_call.1} parent=1 // pred_region
      %114 = dma.done [#allocation6], 16
    $region61: #{tpu_custom_call.1} parent=1 // pred_fallthru
      _
    // Predicated region
    $region62: #{tpu_custom_call.1} parent=1 // pred_check
      _
    $region63: #{tpu_custom_call.1} parent=1 // pred_check_branch
      %116 = sbr.rel (0) target = $region65
    $region64: #{tpu_custom_call.1} parent=1 // pred_region
      %117 = dma.done [#allocation9], 16
    $region65: #{tpu_custom_call.1} parent=1 // pred_fallthru
      _
    // Predicated region
    $region66: #{tpu_custom_call.1} parent=1 // pred_check
      _
    $region67: #{tpu_custom_call.1} parent=1 // pred_check_branch
      %119 = sbr.rel (0) target = $region69
    $region68: #{tpu_custom_call.1} parent=1 // pred_region
      %120 = dma.done [#allocation9], 3584
    $region69: #{tpu_custom_call.1} parent=1 // pred_fallthru
      _
    // Predicated region
    $region70: #{tpu_custom_call.1} parent=1 // pred_check
      _
    $region71: #{tpu_custom_call.1} parent=1 // pred_check_branch
      %122 = sbr.rel (0) target = $region73
    $region72: #{tpu_custom_call.1} parent=1 // pred_region
      %123 = dma.done [#allocation12], 128
    $region73: #{tpu_custom_call.1} parent=1 // pred_fallthru
      _
    // Predicated region
    $region74: #{tpu_custom_call.1} parent=1 // pred_check
      _
    $region75: #{tpu_custom_call.1} parent=1 // pred_check_branch
      %125 = sbr.rel (0) target = $region77
    $region76: #{tpu_custom_call.1} parent=1 // pred_region
      %126 = dma.done [#allocation12], 4608
    $region77: #{tpu_custom_call.1} parent=1 // pred_fallthru
      _
    %v127 = vld [vmem:[#allocation5] sm:$0x3]
    %v128 = vld [vmem:[%s2] sm:$0xff]
    %v129 = vld [vmem:[%s2 + $0x8] sm:$0xff]
    %v130 = vld [vmem:[%s2 + $0x10] sm:$0xff]
    %v131 = vld [vmem:[%s2 + $0x18] sm:$0xff]
    %v132 = vld [vmem:[#allocation7] sm:$0x1]
    %v134 = vlaneseq
    %v135 = vshrl.u32 %v134, 7
    %v136 = vsub.s32 0, %v135
    %v137 = vrot.slane %v132, %v136
    %vm139 = vcmask 261120
    %v141 = vsel %vm139, %v127, 0
    %143 = vmatprep.subr.mxu0 0.0
    %144 = vmatpush1.msra.mxu0 0.0
    %145 = vmatprep.subr.mxu0 0.0
    %146 = vmatpush1.msra.mxu0 0.0
    %147 = vmatprep.subr.mxu0 0.0
    %148 = vmatpush1.msra.mxu0 0.0
    %149 = vmatprep.subr.mxu0 0.0
    %150 = vmatpush1.msra.mxu0 0.0
    %151 = vmatprep.subr.mxu0 0.0
    %152 = vmatpush1.msra.mxu0 0.0
    %153 = vmatprep.subr.mxu0 0.0
    %154 = vmatpush1.msra.mxu0 0.0
    %155 = vmatprep.subr.mxu0 0.0
    %156 = vmatpush1.msra.mxu0 0.0
    %157 = vmatprep.subr.mxu0 0.0
    %158 = vmatpush1.msra.mxu0 0.0
    %159 = vmatprep.subr.mxu0 0.0
    %160 = vmatpush1.msra.mxu0 0.0
    %161 = vmatprep.subr.mxu0 0.0
    %162 = vmatpush1.msra.mxu0 0.0
    %163 = vmatprep.subr.mxu0 0.0
    %164 = vmatpush1.msra.mxu0 0.0
    %165 = vmatprep.subr.mxu0 0.0
    %166 = vmatpush1.msra.mxu0 0.0
    %167 = vmatprep.subr.mxu0 0.0
    %168 = vmatpush1.msra.mxu0 %v131
    %169 = vmatprep.subr.mxu0 0.0
    %170 = vmatpush1.msra.mxu0 %v130
    %171 = vmatprep.subr.mxu0 0.0
    %172 = vmatpush1.msra.mxu0 %v129
    %173 = vmatprep.subr.mxu0 0.0
    %174 = vmatpush1.msra.mxu0 %v128
    %175 = vmatprep.subr.mxu0 0.0
    %176 = vmatpush2.msra.mxu0 0.0
    %177 = vmatprep.subr.mxu0 0.0
    %178 = vmatpush2.msra.mxu0 0.0
    %179 = vmatprep.subr.mxu0 0.0
    %180 = vmatpush2.msra.mxu0 0.0
    %181 = vmatprep.subr.mxu0 0.0
    %182 = vmatpush2.msra.mxu0 0.0
    %183 = vmatprep.subr.mxu0 0.0
    %184 = vmatpush2.msra.mxu0 0.0
    %185 = vmatprep.subr.mxu0 0.0
    %186 = vmatpush2.msra.mxu0 0.0
    %187 = vmatprep.subr.mxu0 0.0
    %188 = vmatpush2.msra.mxu0 0.0
    %189 = vmatprep.subr.mxu0 0.0
    %190 = vmatpush2.msra.mxu0 0.0
    %191 = vmatprep.subr.mxu0 0.0
    %192 = vmatpush2.msra.mxu0 0.0
    %193 = vmatprep.subr.mxu0 0.0
    %194 = vmatpush2.msra.mxu0 0.0
    %195 = vmatprep.subr.mxu0 0.0
    %196 = vmatpush2.msra.mxu0 0.0
    %197 = vmatprep.subr.mxu0 0.0
    %198 = vmatpush2.msra.mxu0 0.0
    %199 = vmatprep.subr.mxu0 0.0
    %200 = vmatpush2.msra.mxu0 0.0
    %201 = vmatprep.subr.mxu0 0.0
    %202 = vmatpush2.msra.mxu0 0.0
    %203 = vmatprep.subr.mxu0 0.0
    %204 = vmatpush2.msra.mxu0 0.0
    %205 = vmatprep.subr.mxu0 0.0
    %206 = vmatpush2.msra.mxu0 0.0
    %207 = vmatprep.mubr.f32.mxu0 0.0
    %208 = vmatmul.mubr.f32.gmra.mxu0 %v141
    %v209 = vpop.f32.mrf.mxu0
    %v210 = vadd.f32 %v137, %v209
    %v211 = vpop.f32.mrf.mxu0
    %212 = vdwg.mxu0
    %vm213 = vcmp.ge.f32.partialorder %v210, 0.0
    %v214 = vmul.f32 %v210, 0.2
    %v215 = vsel %vm213, %v210, %v214
    %v216 = vld [vmem:[%s4] sm:$0xff]
    %v217 = vld [vmem:[%s4 + $0x8] sm:$0xff]
    %v218 = vld [vmem:[%s4 + $0x10] sm:$0xff]
    %v219 = vld [vmem:[%s4 + $0x18] sm:$0xff]
    %v220 = vld [vmem:[%s4 + $0x20] sm:$0xff]
    %v221 = vld [vmem:[%s4 + $0x28] sm:$0xff]
    %v222 = vld [vmem:[%s4 + $0x30] sm:$0xff]
    %v223 = vld [vmem:[%s4 + $0x38] sm:$0xff]
    %v224 = vld [vmem:[#allocation8] sm:$0x1]
    %v226 = vlaneseq
    %v227 = vshrl.u32 %v226, 7
    %v228 = vsub.s32 0, %v227
    %v229 = vrot.slane %v224, %v228
    %vm231 = vcmask 523264
    %v233 = vsel %vm231, %v215, 0
    %235 = vmatprep.subr.mxu0 0.0
    %236 = vmatpush1.msra.mxu0 0.0
    %237 = vmatprep.subr.mxu0 0.0
    %238 = vmatpush1.msra.mxu0 0.0
    %239 = vmatprep.subr.mxu0 0.0
    %240 = vmatpush1.msra.mxu0 0.0
    %241 = vmatprep.subr.mxu0 0.0
    %242 = vmatpush1.msra.mxu0 0.0
    %243 = vmatprep.subr.mxu0 0.0
    %244 = vmatpush1.msra.mxu0 0.0
    %245 = vmatprep.subr.mxu0 0.0
    %246 = vmatpush1.msra.mxu0 0.0
    %247 = vmatprep.subr.mxu0 0.0
    %248 = vmatpush1.msra.mxu0 0.0
    %249 = vmatprep.subr.mxu0 0.0
    %250 = vmatpush1.msra.mxu0 0.0
    %251 = vmatprep.subr.mxu0 0.0
    %252 = vmatpush1.msra.mxu0 %v223
    %253 = vmatprep.subr.mxu0 0.0
    %254 = vmatpush1.msra.mxu0 %v222
    %255 = vmatprep.subr.mxu0 0.0
    %256 = vmatpush1.msra.mxu0 %v221
    %257 = vmatprep.subr.mxu0 0.0
    %258 = vmatpush1.msra.mxu0 %v220
    %259 = vmatprep.subr.mxu0 0.0
    %260 = vmatpush1.msra.mxu0 %v219
    %261 = vmatprep.subr.mxu0 0.0
    %262 = vmatpush1.msra.mxu0 %v218
    %263 = vmatprep.subr.mxu0 0.0
    %264 = vmatpush1.msra.mxu0 %v217
    %265 = vmatprep.subr.mxu0 0.0
    %266 = vmatpush1.msra.mxu0 %v216
    %267 = vmatprep.subr.mxu0 0.0
    %268 = vmatpush2.msra.mxu0 0.0
    %269 = vmatprep.subr.mxu0 0.0
    %270 = vmatpush2.msra.mxu0 0.0
    %271 = vmatprep.subr.mxu0 0.0
    %272 = vmatpush2.msra.mxu0 0.0
    %273 = vmatprep.subr.mxu0 0.0
    %274 = vmatpush2.msra.mxu0 0.0
    %275 = vmatprep.subr.mxu0 0.0
    %276 = vmatpush2.msra.mxu0 0.0
    %277 = vmatprep.subr.mxu0 0.0
    %278 = vmatpush2.msra.mxu0 0.0
    %279 = vmatprep.subr.mxu0 0.0
    %280 = vmatpush2.msra.mxu0 0.0
    %281 = vmatprep.subr.mxu0 0.0
    %282 = vmatpush2.msra.mxu0 0.0
    %283 = vmatprep.subr.mxu0 0.0
    %284 = vmatpush2.msra.mxu0 0.0
    %285 = vmatprep.subr.mxu0 0.0
    %286 = vmatpush2.msra.mxu0 0.0
    %287 = vmatprep.subr.mxu0 0.0
    %288 = vmatpush2.msra.mxu0 0.0
    %289 = vmatprep.subr.mxu0 0.0
    %290 = vmatpush2.msra.mxu0 0.0
    %291 = vmatprep.subr.mxu0 0.0
    %292 = vmatpush2.msra.mxu0 0.0
    %293 = vmatprep.subr.mxu0 0.0
    %294 = vmatpush2.msra.mxu0 0.0
    %295 = vmatprep.subr.mxu0 0.0
    %296 = vmatpush2.msra.mxu0 0.0
    %297 = vmatprep.subr.mxu0 0.0
    %298 = vmatpush2.msra.mxu0 0.0
    %299 = vmatprep.mubr.f32.mxu0 0.0
    %300 = vmatmul.mubr.f32.gmra.mxu0 %v233
    %v301 = vpop.f32.mrf.mxu0
    %v302 = vadd.f32 %v229, %v301
    %v303 = vpop.f32.mrf.mxu0
    %304 = vdwg.mxu0
    %vm305 = vcmp.ge.f32.partialorder %v302, 0.0
    %v306 = vmul.f32 %v302, 0.2
    %v307 = vsel %vm305, %v302, %v306
    %v308 = vld [vmem:[#allocation2] sm:$0x3]
    %v309 = vld [vmem:[%s6] sm:$0xff]
    %v310 = vld [vmem:[%s6 + $0x8] sm:$0xff]
    %v311 = vld [vmem:[%s6 + $0x10] sm:$0xff]
    %v312 = vld [vmem:[%s6 + $0x18] sm:$0xff]
    %v313 = vld [vmem:[%s7] sm:$0xff]
    %v314 = vld [vmem:[%s7 + $0x8] sm:$0xff]
    %vm315 = vcmask 130048
    %v317 = vsel %vm315, %v307, 0
    %319 = vmatprep.subr.mxu0 0.0
    %320 = vmatpush1.msra.mxu0 0.0
    %321 = vmatprep.subr.mxu0 0.0
    %322 = vmatpush1.msra.mxu0 0.0
    %323 = vmatprep.subr.mxu0 0.0
    %324 = vmatpush1.msra.mxu0 0.0
    %325 = vmatprep.subr.mxu0 0.0
    %326 = vmatpush1.msra.mxu0 0.0
    %327 = vmatprep.subr.mxu0 0.0
    %328 = vmatpush1.msra.mxu0 0.0
    %329 = vmatprep.subr.mxu0 0.0
    %330 = vmatpush1.msra.mxu0 0.0
    %331 = vmatprep.subr.mxu0 0.0
    %332 = vmatpush1.msra.mxu0 0.0
    %333 = vmatprep.subr.mxu0 0.0
    %334 = vmatpush1.msra.mxu0 0.0
    %335 = vmatprep.subr.mxu0 0.0
    %336 = vmatpush1.msra.mxu0 0.0
    %337 = vmatprep.subr.mxu0 0.0
    %338 = vmatpush1.msra.mxu0 0.0
    %339 = vmatprep.subr.mxu0 0.0
    %340 = vmatpush1.msra.mxu0 0.0
    %341 = vmatprep.subr.mxu0 0.0
    %342 = vmatpush1.msra.mxu0 0.0
    %343 = vmatprep.subr.mxu0 0.0
    %344 = vmatpush1.msra.mxu0 0.0
    %345 = vmatprep.subr.mxu0 0.0
    %346 = vmatpush1.msra.mxu0 0.0
    %347 = vmatprep.subr.mxu0 0.0
    %348 = vmatpush1.msra.mxu0 %v314
    %349 = vmatprep.subr.mxu0 0.0
    %350 = vmatpush1.msra.mxu0 %v313
    %351 = vmatprep.subr.mxu0 0.0
    %352 = vmatpush2.msra.mxu0 0.0
    %353 = vmatprep.subr.mxu0 0.0
    %354 = vmatpush2.msra.mxu0 0.0
    %355 = vmatprep.subr.mxu0 0.0
    %356 = vmatpush2.msra.mxu0 0.0
    %357 = vmatprep.subr.mxu0 0.0
    %358 = vmatpush2.msra.mxu0 0.0
    %359 = vmatprep.subr.mxu0 0.0
    %360 = vmatpush2.msra.mxu0 0.0
    %361 = vmatprep.subr.mxu0 0.0
    %362 = vmatpush2.msra.mxu0 0.0
    %363 = vmatprep.subr.mxu0 0.0
    %364 = vmatpush2.msra.mxu0 0.0
    %365 = vmatprep.subr.mxu0 0.0
    %366 = vmatpush2.msra.mxu0 0.0
    %367 = vmatprep.subr.mxu0 0.0
    %368 = vmatpush2.msra.mxu0 0.0
    %369 = vmatprep.subr.mxu0 0.0
    %370 = vmatpush2.msra.mxu0 0.0
    %371 = vmatprep.subr.mxu0 0.0
    %372 = vmatpush2.msra.mxu0 0.0
    %373 = vmatprep.subr.mxu0 0.0
    %374 = vmatpush2.msra.mxu0 0.0
    %375 = vmatprep.subr.mxu0 0.0
    %376 = vmatpush2.msra.mxu0 0.0
    %377 = vmatprep.subr.mxu0 0.0
    %378 = vmatpush2.msra.mxu0 0.0
    %379 = vmatprep.subr.mxu0 0.0
    %380 = vmatpush2.msra.mxu0 0.0
    %381 = vmatprep.subr.mxu0 0.0
    %382 = vmatpush2.msra.mxu0 0.0
    %383 = vmatprep.mubr.f32.mxu0 0.0
    %384 = vmatmul.mubr.f32.gmra.mxu0 %v317
    %v385 = vpop.f32.mrf.mxu0
    %v386 = vadd.f32 0.0, %v385
    %v387 = vpop.f32.mrf.mxu0
    %388 = vdwg.mxu0
    %v390 = vsel %vm139, %v308, 0
    %392 = vmatprep.subr.mxu0 0.0
    %393 = vmatpush1.msra.mxu0 0.0
    %394 = vmatprep.subr.mxu0 0.0
    %395 = vmatpush1.msra.mxu0 0.0
    %396 = vmatprep.subr.mxu0 0.0
    %397 = vmatpush1.msra.mxu0 0.0
    %398 = vmatprep.subr.mxu0 0.0
    %399 = vmatpush1.msra.mxu0 0.0
    %400 = vmatprep.subr.mxu0 0.0
    %401 = vmatpush1.msra.mxu0 0.0
    %402 = vmatprep.subr.mxu0 0.0
    %403 = vmatpush1.msra.mxu0 0.0
    %404 = vmatprep.subr.mxu0 0.0
    %405 = vmatpush1.msra.mxu0 0.0
    %406 = vmatprep.subr.mxu0 0.0
    %407 = vmatpush1.msra.mxu0 0.0
    %408 = vmatprep.subr.mxu0 0.0
    %409 = vmatpush1.msra.mxu0 0.0
    %410 = vmatprep.subr.mxu0 0.0
    %411 = vmatpush1.msra.mxu0 0.0
    %412 = vmatprep.subr.mxu0 0.0
    %413 = vmatpush1.msra.mxu0 0.0
    %414 = vmatprep.subr.mxu0 0.0
    %415 = vmatpush1.msra.mxu0 0.0
    %416 = vmatprep.subr.mxu0 0.0
    %417 = vmatpush1.msra.mxu0 %v312
    %418 = vmatprep.subr.mxu0 0.0
    %419 = vmatpush1.msra.mxu0 %v311
    %420 = vmatprep.subr.mxu0 0.0
    %421 = vmatpush1.msra.mxu0 %v310
    %422 = vmatprep.subr.mxu0 0.0
    %423 = vmatpush1.msra.mxu0 %v309
    %424 = vmatprep.subr.mxu0 0.0
    %425 = vmatpush2.msra.mxu0 0.0
    %426 = vmatprep.subr.mxu0 0.0
    %427 = vmatpush2.msra.mxu0 0.0
    %428 = vmatprep.subr.mxu0 0.0
    %429 = vmatpush2.msra.mxu0 0.0
    %430 = vmatprep.subr.mxu0 0.0
    %431 = vmatpush2.msra.mxu0 0.0
    %432 = vmatprep.subr.mxu0 0.0
    %433 = vmatpush2.msra.mxu0 0.0
    %434 = vmatprep.subr.mxu0 0.0
    %435 = vmatpush2.msra.mxu0 0.0
    %436 = vmatprep.subr.mxu0 0.0
    %437 = vmatpush2.msra.mxu0 0.0
    %438 = vmatprep.subr.mxu0 0.0
    %439 = vmatpush2.msra.mxu0 0.0
    %440 = vmatprep.subr.mxu0 0.0
    %441 = vmatpush2.msra.mxu0 0.0
    %442 = vmatprep.subr.mxu0 0.0
    %443 = vmatpush2.msra.mxu0 0.0
    %444 = vmatprep.subr.mxu0 0.0
    %445 = vmatpush2.msra.mxu0 0.0
    %446 = vmatprep.subr.mxu0 0.0
    %447 = vmatpush2.msra.mxu0 0.0
    %448 = vmatprep.subr.mxu0 0.0
    %449 = vmatpush2.msra.mxu0 0.0
    %450 = vmatprep.subr.mxu0 0.0
    %451 = vmatpush2.msra.mxu0 0.0
    %452 = vmatprep.subr.mxu0 0.0
    %453 = vmatpush2.msra.mxu0 0.0
    %454 = vmatprep.subr.mxu0 0.0
    %455 = vmatpush2.msra.mxu0 0.0
    %456 = vmatprep.mubr.f32.mxu0 0.0
    %457 = vmatmul.mubr.f32.gmra.mxu0 %v390
    %v458 = vpop.f32.mrf.mxu0
    %v459 = vadd.f32 %v386, %v458
    %v460 = vpop.f32.mrf.mxu0
    %461 = vdwg.mxu0
    %v462 = vld [vmem:[#allocation11] sm:$0x1]
    %v463 = vlaneseq
    %v464 = vshrl.u32 %v463, 7
    %v465 = vsub.s32 0, %v464
    %v466 = vrot.slane %v462, %v465
    %v467 = vadd.f32 %v459, %v466
    %vm468 = vcmp.ge.f32.partialorder %v467, 0.0
    %v469 = vmul.f32 %v467, 0.2
    %v470 = vsel %vm468, %v467, %v469
    %v471 = vld [vmem:[#allocation10] sm:$0xff]
    %v472 = vld [vmem:[#allocation10 + $0x8] sm:$0xff]
    %v473 = vld [vmem:[#allocation10 + $0x10] sm:$0xff]
    %v474 = vld [vmem:[#allocation10 + $0x18] sm:$0xff]
    %v475 = vld [vmem:[#allocation11 + $0x1] sm:$0x1]
    %v476 = vlaneseq
    %v477 = vshrl.u32 %v476, 7
    %v478 = vsub.s32 0, %v477
    %v479 = vrot.slane %v475, %v478
    %v481 = vsel %vm139, %v470, 0
    %483 = vmatprep.subr.mxu0 0.0
    %484 = vmatpush1.msra.mxu0 0.0
    %485 = vmatprep.subr.mxu0 0.0
    %486 = vmatpush1.msra.mxu0 0.0
    %487 = vmatprep.subr.mxu0 0.0
    %488 = vmatpush1.msra.mxu0 0.0
    %489 = vmatprep.subr.mxu0 0.0
    %490 = vmatpush1.msra.mxu0 0.0
    %491 = vmatprep.subr.mxu0 0.0
    %492 = vmatpush1.msra.mxu0 0.0
    %493 = vmatprep.subr.mxu0 0.0
    %494 = vmatpush1.msra.mxu0 0.0
    %495 = vmatprep.subr.mxu0 0.0
    %496 = vmatpush1.msra.mxu0 0.0
    %497 = vmatprep.subr.mxu0 0.0
    %498 = vmatpush1.msra.mxu0 0.0
    %499 = vmatprep.subr.mxu0 0.0
    %500 = vmatpush1.msra.mxu0 0.0
    %501 = vmatprep.subr.mxu0 0.0
    %502 = vmatpush1.msra.mxu0 0.0
    %503 = vmatprep.subr.mxu0 0.0
    %504 = vmatpush1.msra.mxu0 0.0
    %505 = vmatprep.subr.mxu0 0.0
    %506 = vmatpush1.msra.mxu0 0.0
    %507 = vmatprep.subr.mxu0 0.0
    %508 = vmatpush1.msra.mxu0 %v474
    %509 = vmatprep.subr.mxu0 0.0
    %510 = vmatpush1.msra.mxu0 %v473
    %511 = vmatprep.subr.mxu0 0.0
    %512 = vmatpush1.msra.mxu0 %v472
    %513 = vmatprep.subr.mxu0 0.0
    %514 = vmatpush1.msra.mxu0 %v471
    %515 = vmatprep.subr.mxu0 0.0
    %516 = vmatpush2.msra.mxu0 0.0
    %517 = vmatprep.subr.mxu0 0.0
    %518 = vmatpush2.msra.mxu0 0.0
    %519 = vmatprep.subr.mxu0 0.0
    %520 = vmatpush2.msra.mxu0 0.0
    %521 = vmatprep.subr.mxu0 0.0
    %522 = vmatpush2.msra.mxu0 0.0
    %523 = vmatprep.subr.mxu0 0.0
    %524 = vmatpush2.msra.mxu0 0.0
    %525 = vmatprep.subr.mxu0 0.0
    %526 = vmatpush2.msra.mxu0 0.0
    %527 = vmatprep.subr.mxu0 0.0
    %528 = vmatpush2.msra.mxu0 0.0
    %529 = vmatprep.subr.mxu0 0.0
    %530 = vmatpush2.msra.mxu0 0.0
    %531 = vmatprep.subr.mxu0 0.0
    %532 = vmatpush2.msra.mxu0 0.0
    %533 = vmatprep.subr.mxu0 0.0
    %534 = vmatpush2.msra.mxu0 0.0
    %535 = vmatprep.subr.mxu0 0.0
    %536 = vmatpush2.msra.mxu0 0.0
    %537 = vmatprep.subr.mxu0 0.0
    %538 = vmatpush2.msra.mxu0 0.0
    %539 = vmatprep.subr.mxu0 0.0
    %540 = vmatpush2.msra.mxu0 0.0
    %541 = vmatprep.subr.mxu0 0.0
    %542 = vmatpush2.msra.mxu0 0.0
    %543 = vmatprep.subr.mxu0 0.0
    %544 = vmatpush2.msra.mxu0 0.0
    %545 = vmatprep.subr.mxu0 0.0
    %546 = vmatpush2.msra.mxu0 0.0
    %547 = vmatprep.mubr.f32.mxu0 0.0
    %548 = vmatmul.mubr.f32.gmra.mxu0 %v481
    %v549 = vpop.f32.mrf.mxu0
    %v550 = vadd.f32 %v479, %v549
    %v551 = vpop.f32.mrf.mxu0
    %552 = vdwg.mxu0
    %vm553 = vcmp.ge.f32.partialorder %v550, 0.0
    %v554 = vmul.f32 %v550, 0.2
    %v555 = vsel %vm553, %v550, %v554
    %s556 = scalar_lea.vmem [#allocation10], 32
    %v557 = vld [vmem:[%s556] sm:$0xff]
    %v558 = vld [vmem:[%s556 + $0x8] sm:$0xff]
    %v559 = vld [vmem:[%s556 + $0x10] sm:$0xff]
    %v560 = vld [vmem:[%s556 + $0x18] sm:$0xff]
    %v561 = vld [vmem:[#allocation11 + $0x2] sm:$0x1]
    %v562 = vlaneseq
    %v563 = vshrl.u32 %v562, 7
    %v564 = vsub.s32 0, %v563
    %v565 = vrot.slane %v561, %v564
    %v567 = vsel %vm139, %v555, 0
    %569 = vmatprep.subr.mxu0 0.0
    %570 = vmatpush1.msra.mxu0 0.0
    %571 = vmatprep.subr.mxu0 0.0
    %572 = vmatpush1.msra.mxu0 0.0
    %573 = vmatprep.subr.mxu0 0.0
    %574 = vmatpush1.msra.mxu0 0.0
    %575 = vmatprep.subr.mxu0 0.0
    %576 = vmatpush1.msra.mxu0 0.0
    %577 = vmatprep.subr.mxu0 0.0
    %578 = vmatpush1.msra.mxu0 0.0
    %579 = vmatprep.subr.mxu0 0.0
    %580 = vmatpush1.msra.mxu0 0.0
    %581 = vmatprep.subr.mxu0 0.0
    %582 = vmatpush1.msra.mxu0 0.0
    %583 = vmatprep.subr.mxu0 0.0
    %584 = vmatpush1.msra.mxu0 0.0
    %585 = vmatprep.subr.mxu0 0.0
    %586 = vmatpush1.msra.mxu0 0.0
    %587 = vmatprep.subr.mxu0 0.0
    %588 = vmatpush1.msra.mxu0 0.0
    %589 = vmatprep.subr.mxu0 0.0
    %590 = vmatpush1.msra.mxu0 0.0
    %591 = vmatprep.subr.mxu0 0.0
    %592 = vmatpush1.msra.mxu0 0.0
    %593 = vmatprep.subr.mxu0 0.0
    %594 = vmatpush1.msra.mxu0 %v560
    %595 = vmatprep.subr.mxu0 0.0
    %596 = vmatpush1.msra.mxu0 %v559
    %597 = vmatprep.subr.mxu0 0.0
    %598 = vmatpush1.msra.mxu0 %v558
    %599 = vmatprep.subr.mxu0 0.0
    %600 = vmatpush1.msra.mxu0 %v557
    %601 = vmatprep.subr.mxu0 0.0
    %602 = vmatpush2.msra.mxu0 0.0
    %603 = vmatprep.subr.mxu0 0.0
    %604 = vmatpush2.msra.mxu0 0.0
    %605 = vmatprep.subr.mxu0 0.0
    %606 = vmatpush2.msra.mxu0 0.0
    %607 = vmatprep.subr.mxu0 0.0
    %608 = vmatpush2.msra.mxu0 0.0
    %609 = vmatprep.subr.mxu0 0.0
    %610 = vmatpush2.msra.mxu0 0.0
    %611 = vmatprep.subr.mxu0 0.0
    %612 = vmatpush2.msra.mxu0 0.0
    %613 = vmatprep.subr.mxu0 0.0
    %614 = vmatpush2.msra.mxu0 0.0
    %615 = vmatprep.subr.mxu0 0.0
    %616 = vmatpush2.msra.mxu0 0.0
    %617 = vmatprep.subr.mxu0 0.0
    %618 = vmatpush2.msra.mxu0 0.0
    %619 = vmatprep.subr.mxu0 0.0
    %620 = vmatpush2.msra.mxu0 0.0
    %621 = vmatprep.subr.mxu0 0.0
    %622 = vmatpush2.msra.mxu0 0.0
    %623 = vmatprep.subr.mxu0 0.0
    %624 = vmatpush2.msra.mxu0 0.0
    %625 = vmatprep.subr.mxu0 0.0
    %626 = vmatpush2.msra.mxu0 0.0
    %627 = vmatprep.subr.mxu0 0.0
    %628 = vmatpush2.msra.mxu0 0.0
    %629 = vmatprep.subr.mxu0 0.0
    %630 = vmatpush2.msra.mxu0 0.0
    %631 = vmatprep.subr.mxu0 0.0
    %632 = vmatpush2.msra.mxu0 0.0
    %633 = vmatprep.mubr.f32.mxu0 0.0
    %634 = vmatmul.mubr.f32.gmra.mxu0 %v567
    %v635 = vpop.f32.mrf.mxu0
    %v636 = vadd.f32 %v565, %v635
    %v637 = vpop.f32.mrf.mxu0
    %638 = vdwg.mxu0
    %vm639 = vcmp.ge.f32.partialorder %v636, 0.0
    %v640 = vmul.f32 %v636, 0.2
    %v641 = vsel %vm639, %v636, %v640
    %s642 = scalar_lea.vmem [#allocation10], 64
    %v643 = vld [vmem:[%s642] sm:$0xff]
    %v644 = vld [vmem:[%s642 + $0x8] sm:$0xff]
    %v645 = vld [vmem:[%s642 + $0x10] sm:$0xff]
    %v646 = vld [vmem:[%s642 + $0x18] sm:$0xff]
    %v647 = vld [vmem:[#allocation11 + $0x3] sm:$0x1]
    %v648 = vlaneseq
    %v649 = vshrl.u32 %v648, 7
    %v650 = vsub.s32 0, %v649
    %v651 = vrot.slane %v647, %v650
    %v653 = vsel %vm139, %v641, 0
    %655 = vmatprep.subr.mxu0 0.0
    %656 = vmatpush1.msra.mxu0 0.0
    %657 = vmatprep.subr.mxu0 0.0
    %658 = vmatpush1.msra.mxu0 0.0
    %659 = vmatprep.subr.mxu0 0.0
    %660 = vmatpush1.msra.mxu0 0.0
    %661 = vmatprep.subr.mxu0 0.0
    %662 = vmatpush1.msra.mxu0 0.0
    %663 = vmatprep.subr.mxu0 0.0
    %664 = vmatpush1.msra.mxu0 0.0
    %665 = vmatprep.subr.mxu0 0.0
    %666 = vmatpush1.msra.mxu0 0.0
    %667 = vmatprep.subr.mxu0 0.0
    %668 = vmatpush1.msra.mxu0 0.0
    %669 = vmatprep.subr.mxu0 0.0
    %670 = vmatpush1.msra.mxu0 0.0
    %671 = vmatprep.subr.mxu0 0.0
    %672 = vmatpush1.msra.mxu0 0.0
    %673 = vmatprep.subr.mxu0 0.0
    %674 = vmatpush1.msra.mxu0 0.0
    %675 = vmatprep.subr.mxu0 0.0
    %676 = vmatpush1.msra.mxu0 0.0
    %677 = vmatprep.subr.mxu0 0.0
    %678 = vmatpush1.msra.mxu0 0.0
    %679 = vmatprep.subr.mxu0 0.0
    %680 = vmatpush1.msra.mxu0 %v646
    %681 = vmatprep.subr.mxu0 0.0
    %682 = vmatpush1.msra.mxu0 %v645
    %683 = vmatprep.subr.mxu0 0.0
    %684 = vmatpush1.msra.mxu0 %v644
    %685 = vmatprep.subr.mxu0 0.0
    %686 = vmatpush1.msra.mxu0 %v643
    %687 = vmatprep.subr.mxu0 0.0
    %688 = vmatpush2.msra.mxu0 0.0
    %689 = vmatprep.subr.mxu0 0.0
    %690 = vmatpush2.msra.mxu0 0.0
    %691 = vmatprep.subr.mxu0 0.0
    %692 = vmatpush2.msra.mxu0 0.0
    %693 = vmatprep.subr.mxu0 0.0
    %694 = vmatpush2.msra.mxu0 0.0
    %695 = vmatprep.subr.mxu0 0.0
    %696 = vmatpush2.msra.mxu0 0.0
    %697 = vmatprep.subr.mxu0 0.0
    %698 = vmatpush2.msra.mxu0 0.0
    %699 = vmatprep.subr.mxu0 0.0
    %700 = vmatpush2.msra.mxu0 0.0
    %701 = vmatprep.subr.mxu0 0.0
    %702 = vmatpush2.msra.mxu0 0.0
    %703 = vmatprep.subr.mxu0 0.0
    %704 = vmatpush2.msra.mxu0 0.0
    %705 = vmatprep.subr.mxu0 0.0
    %706 = vmatpush2.msra.mxu0 0.0
    %707 = vmatprep.subr.mxu0 0.0
    %708 = vmatpush2.msra.mxu0 0.0
    %709 = vmatprep.subr.mxu0 0.0
    %710 = vmatpush2.msra.mxu0 0.0
    %711 = vmatprep.subr.mxu0 0.0
    %712 = vmatpush2.msra.mxu0 0.0
    %713 = vmatprep.subr.mxu0 0.0
    %714 = vmatpush2.msra.mxu0 0.0
    %715 = vmatprep.subr.mxu0 0.0
    %716 = vmatpush2.msra.mxu0 0.0
    %717 = vmatprep.subr.mxu0 0.0
    %718 = vmatpush2.msra.mxu0 0.0
    %719 = vmatprep.mubr.f32.mxu0 0.0
    %720 = vmatmul.mubr.f32.gmra.mxu0 %v653
    %v721 = vpop.f32.mrf.mxu0
    %v722 = vadd.f32 %v651, %v721
    %v723 = vpop.f32.mrf.mxu0
    %724 = vdwg.mxu0
    %vm725 = vcmp.ge.f32.partialorder %v722, 0.0
    %v726 = vmul.f32 %v722, 0.2
    %v727 = vsel %vm725, %v722, %v726
    %s728 = scalar_lea.vmem [#allocation10], 96
    %v729 = vld [vmem:[%s728] sm:$0xff]
    %v730 = vld [vmem:[%s728 + $0x8] sm:$0xff]
    %v731 = vld [vmem:[%s728 + $0x10] sm:$0xff]
    %v732 = vld [vmem:[%s728 + $0x18] sm:$0xff]
    %v733 = vld [vmem:[#allocation11 + $0x4] sm:$0x1]
    %v734 = vlaneseq
    %v735 = vshrl.u32 %v734, 7
    %v736 = vsub.s32 0, %v735
    %v737 = vrot.slane %v733, %v736
    %v739 = vsel %vm139, %v727, 0
    %741 = vmatprep.subr.mxu0 0.0
    %742 = vmatpush1.msra.mxu0 0.0
    %743 = vmatprep.subr.mxu0 0.0
    %744 = vmatpush1.msra.mxu0 0.0
    %745 = vmatprep.subr.mxu0 0.0
    %746 = vmatpush1.msra.mxu0 0.0
    %747 = vmatprep.subr.mxu0 0.0
    %748 = vmatpush1.msra.mxu0 0.0
    %749 = vmatprep.subr.mxu0 0.0
    %750 = vmatpush1.msra.mxu0 0.0
    %751 = vmatprep.subr.mxu0 0.0
    %752 = vmatpush1.msra.mxu0 0.0
    %753 = vmatprep.subr.mxu0 0.0
    %754 = vmatpush1.msra.mxu0 0.0
    %755 = vmatprep.subr.mxu0 0.0
    %756 = vmatpush1.msra.mxu0 0.0
    %757 = vmatprep.subr.mxu0 0.0
    %758 = vmatpush1.msra.mxu0 0.0
    %759 = vmatprep.subr.mxu0 0.0
    %760 = vmatpush1.msra.mxu0 0.0
    %761 = vmatprep.subr.mxu0 0.0
    %762 = vmatpush1.msra.mxu0 0.0
    %763 = vmatprep.subr.mxu0 0.0
    %764 = vmatpush1.msra.mxu0 0.0
    %765 = vmatprep.subr.mxu0 0.0
    %766 = vmatpush1.msra.mxu0 %v732
    %767 = vmatprep.subr.mxu0 0.0
    %768 = vmatpush1.msra.mxu0 %v731
    %769 = vmatprep.subr.mxu0 0.0
    %770 = vmatpush1.msra.mxu0 %v730
    %771 = vmatprep.subr.mxu0 0.0
    %772 = vmatpush1.msra.mxu0 %v729
    %773 = vmatprep.subr.mxu0 0.0
    %774 = vmatpush2.msra.mxu0 0.0
    %775 = vmatprep.subr.mxu0 0.0
    %776 = vmatpush2.msra.mxu0 0.0
    %777 = vmatprep.subr.mxu0 0.0
    %778 = vmatpush2.msra.mxu0 0.0
    %779 = vmatprep.subr.mxu0 0.0
    %780 = vmatpush2.msra.mxu0 0.0
    %781 = vmatprep.subr.mxu0 0.0
    %782 = vmatpush2.msra.mxu0 0.0
    %783 = vmatprep.subr.mxu0 0.0
    %784 = vmatpush2.msra.mxu0 0.0
    %785 = vmatprep.subr.mxu0 0.0
    %786 = vmatpush2.msra.mxu0 0.0
    %787 = vmatprep.subr.mxu0 0.0
    %788 = vmatpush2.msra.mxu0 0.0
    %789 = vmatprep.subr.mxu0 0.0
    %790 = vmatpush2.msra.mxu0 0.0
    %791 = vmatprep.subr.mxu0 0.0
    %792 = vmatpush2.msra.mxu0 0.0
    %793 = vmatprep.subr.mxu0 0.0
    %794 = vmatpush2.msra.mxu0 0.0
    %795 = vmatprep.subr.mxu0 0.0
    %796 = vmatpush2.msra.mxu0 0.0
    %797 = vmatprep.subr.mxu0 0.0
    %798 = vmatpush2.msra.mxu0 0.0
    %799 = vmatprep.subr.mxu0 0.0
    %800 = vmatpush2.msra.mxu0 0.0
    %801 = vmatprep.subr.mxu0 0.0
    %802 = vmatpush2.msra.mxu0 0.0
    %803 = vmatprep.subr.mxu0 0.0
    %804 = vmatpush2.msra.mxu0 0.0
    %805 = vmatprep.mubr.f32.mxu0 0.0
    %806 = vmatmul.mubr.f32.gmra.mxu0 %v739
    %v807 = vpop.f32.mrf.mxu0
    %v808 = vadd.f32 %v737, %v807
    %v809 = vpop.f32.mrf.mxu0
    %810 = vdwg.mxu0
    %vm811 = vcmp.ge.f32.partialorder %v808, 0.0
    %v812 = vmul.f32 %v808, 0.2
    %v813 = vsel %vm811, %v808, %v812
    %s814 = scalar_lea.vmem [#allocation10], 128
    %v815 = vld [vmem:[%s814] sm:$0xff]
    %v816 = vld [vmem:[%s814 + $0x8] sm:$0xff]
    %v817 = vld [vmem:[%s814 + $0x10] sm:$0xff]
    %v818 = vld [vmem:[%s814 + $0x18] sm:$0xff]
    %v819 = vld [vmem:[#allocation11 + $0x5] sm:$0x1]
    %v820 = vlaneseq
    %v821 = vshrl.u32 %v820, 7
    %v822 = vsub.s32 0, %v821
    %v823 = vrot.slane %v819, %v822
    %v825 = vsel %vm139, %v813, 0
    %827 = vmatprep.subr.mxu0 0.0
    %828 = vmatpush1.msra.mxu0 0.0
    %829 = vmatprep.subr.mxu0 0.0
    %830 = vmatpush1.msra.mxu0 0.0
    %831 = vmatprep.subr.mxu0 0.0
    %832 = vmatpush1.msra.mxu0 0.0
    %833 = vmatprep.subr.mxu0 0.0
    %834 = vmatpush1.msra.mxu0 0.0
    %835 = vmatprep.subr.mxu0 0.0
    %836 = vmatpush1.msra.mxu0 0.0
    %837 = vmatprep.subr.mxu0 0.0
    %838 = vmatpush1.msra.mxu0 0.0
    %839 = vmatprep.subr.mxu0 0.0
    %840 = vmatpush1.msra.mxu0 0.0
    %841 = vmatprep.subr.mxu0 0.0
    %842 = vmatpush1.msra.mxu0 0.0
    %843 = vmatprep.subr.mxu0 0.0
    %844 = vmatpush1.msra.mxu0 0.0
    %845 = vmatprep.subr.mxu0 0.0
    %846 = vmatpush1.msra.mxu0 0.0
    %847 = vmatprep.subr.mxu0 0.0
    %848 = vmatpush1.msra.mxu0 0.0
    %849 = vmatprep.subr.mxu0 0.0
    %850 = vmatpush1.msra.mxu0 0.0
    %851 = vmatprep.subr.mxu0 0.0
    %852 = vmatpush1.msra.mxu0 %v818
    %853 = vmatprep.subr.mxu0 0.0
    %854 = vmatpush1.msra.mxu0 %v817
    %855 = vmatprep.subr.mxu0 0.0
    %856 = vmatpush1.msra.mxu0 %v816
    %857 = vmatprep.subr.mxu0 0.0
    %858 = vmatpush1.msra.mxu0 %v815
    %859 = vmatprep.subr.mxu0 0.0
    %860 = vmatpush2.msra.mxu0 0.0
    %861 = vmatprep.subr.mxu0 0.0
    %862 = vmatpush2.msra.mxu0 0.0
    %863 = vmatprep.subr.mxu0 0.0
    %864 = vmatpush2.msra.mxu0 0.0
    %865 = vmatprep.subr.mxu0 0.0
    %866 = vmatpush2.msra.mxu0 0.0
    %867 = vmatprep.subr.mxu0 0.0
    %868 = vmatpush2.msra.mxu0 0.0
    %869 = vmatprep.subr.mxu0 0.0
    %870 = vmatpush2.msra.mxu0 0.0
    %871 = vmatprep.subr.mxu0 0.0
    %872 = vmatpush2.msra.mxu0 0.0
    %873 = vmatprep.subr.mxu0 0.0
    %874 = vmatpush2.msra.mxu0 0.0
    %875 = vmatprep.subr.mxu0 0.0
    %876 = vmatpush2.msra.mxu0 0.0
    %877 = vmatprep.subr.mxu0 0.0
    %878 = vmatpush2.msra.mxu0 0.0
    %879 = vmatprep.subr.mxu0 0.0
    %880 = vmatpush2.msra.mxu0 0.0
    %881 = vmatprep.subr.mxu0 0.0
    %882 = vmatpush2.msra.mxu0 0.0
    %883 = vmatprep.subr.mxu0 0.0
    %884 = vmatpush2.msra.mxu0 0.0
    %885 = vmatprep.subr.mxu0 0.0
    %886 = vmatpush2.msra.mxu0 0.0
    %887 = vmatprep.subr.mxu0 0.0
    %888 = vmatpush2.msra.mxu0 0.0
    %889 = vmatprep.subr.mxu0 0.0
    %890 = vmatpush2.msra.mxu0 0.0
    %891 = vmatprep.mubr.f32.mxu0 0.0
    %892 = vmatmul.mubr.f32.gmra.mxu0 %v825
    %v893 = vpop.f32.mrf.mxu0
    %v894 = vadd.f32 %v823, %v893
    %v895 = vpop.f32.mrf.mxu0
    %896 = vdwg.mxu0
    %vm897 = vcmp.ge.f32.partialorder %v894, 0.0
    %v898 = vmul.f32 %v894, 0.2
    %v899 = vsel %vm897, %v894, %v898
    %s900 = scalar_lea.vmem [#allocation10], 160
    %v901 = vld [vmem:[%s900] sm:$0xff]
    %v902 = vld [vmem:[%s900 + $0x8] sm:$0xff]
    %v903 = vld [vmem:[%s900 + $0x10] sm:$0xff]
    %v904 = vld [vmem:[%s900 + $0x18] sm:$0xff]
    %v905 = vld [vmem:[#allocation11 + $0x6] sm:$0x1]
    %v906 = vlaneseq
    %v907 = vshrl.u32 %v906, 7
    %v908 = vsub.s32 0, %v907
    %v909 = vrot.slane %v905, %v908
    %v911 = vsel %vm139, %v899, 0
    %913 = vmatprep.subr.mxu0 0.0
    %914 = vmatpush1.msra.mxu0 0.0
    %915 = vmatprep.subr.mxu0 0.0
    %916 = vmatpush1.msra.mxu0 0.0
    %917 = vmatprep.subr.mxu0 0.0
    %918 = vmatpush1.msra.mxu0 0.0
    %919 = vmatprep.subr.mxu0 0.0
    %920 = vmatpush1.msra.mxu0 0.0
    %921 = vmatprep.subr.mxu0 0.0
    %922 = vmatpush1.msra.mxu0 0.0
    %923 = vmatprep.subr.mxu0 0.0
    %924 = vmatpush1.msra.mxu0 0.0
    %925 = vmatprep.subr.mxu0 0.0
    %926 = vmatpush1.msra.mxu0 0.0
    %927 = vmatprep.subr.mxu0 0.0
    %928 = vmatpush1.msra.mxu0 0.0
    %929 = vmatprep.subr.mxu0 0.0
    %930 = vmatpush1.msra.mxu0 0.0
    %931 = vmatprep.subr.mxu0 0.0
    %932 = vmatpush1.msra.mxu0 0.0
    %933 = vmatprep.subr.mxu0 0.0
    %934 = vmatpush1.msra.mxu0 0.0
    %935 = vmatprep.subr.mxu0 0.0
    %936 = vmatpush1.msra.mxu0 0.0
    %937 = vmatprep.subr.mxu0 0.0
    %938 = vmatpush1.msra.mxu0 %v904
    %939 = vmatprep.subr.mxu0 0.0
    %940 = vmatpush1.msra.mxu0 %v903
    %941 = vmatprep.subr.mxu0 0.0
    %942 = vmatpush1.msra.mxu0 %v902
    %943 = vmatprep.subr.mxu0 0.0
    %944 = vmatpush1.msra.mxu0 %v901
    %945 = vmatprep.subr.mxu0 0.0
    %946 = vmatpush2.msra.mxu0 0.0
    %947 = vmatprep.subr.mxu0 0.0
    %948 = vmatpush2.msra.mxu0 0.0
    %949 = vmatprep.subr.mxu0 0.0
    %950 = vmatpush2.msra.mxu0 0.0
    %951 = vmatprep.subr.mxu0 0.0
    %952 = vmatpush2.msra.mxu0 0.0
    %953 = vmatprep.subr.mxu0 0.0
    %954 = vmatpush2.msra.mxu0 0.0
    %955 = vmatprep.subr.mxu0 0.0
    %956 = vmatpush2.msra.mxu0 0.0
    %957 = vmatprep.subr.mxu0 0.0
    %958 = vmatpush2.msra.mxu0 0.0
    %959 = vmatprep.subr.mxu0 0.0
    %960 = vmatpush2.msra.mxu0 0.0
    %961 = vmatprep.subr.mxu0 0.0
    %962 = vmatpush2.msra.mxu0 0.0
    %963 = vmatprep.subr.mxu0 0.0
    %964 = vmatpush2.msra.mxu0 0.0
    %965 = vmatprep.subr.mxu0 0.0
    %966 = vmatpush2.msra.mxu0 0.0
    %967 = vmatprep.subr.mxu0 0.0
    %968 = vmatpush2.msra.mxu0 0.0
    %969 = vmatprep.subr.mxu0 0.0
    %970 = vmatpush2.msra.mxu0 0.0
    %971 = vmatprep.subr.mxu0 0.0
    %972 = vmatpush2.msra.mxu0 0.0
    %973 = vmatprep.subr.mxu0 0.0
    %974 = vmatpush2.msra.mxu0 0.0
    %975 = vmatprep.subr.mxu0 0.0
    %976 = vmatpush2.msra.mxu0 0.0
    %977 = vmatprep.mubr.f32.mxu0 0.0
    %978 = vmatmul.mubr.f32.gmra.mxu0 %v911
    %v979 = vpop.f32.mrf.mxu0
    %v980 = vadd.f32 %v909, %v979
    %v981 = vpop.f32.mrf.mxu0
    %982 = vdwg.mxu0
    %vm983 = vcmp.ge.f32.partialorder %v980, 0.0
    %v984 = vmul.f32 %v980, 0.2
    %v985 = vsel %vm983, %v980, %v984
    %s986 = scalar_lea.vmem [#allocation10], 192
    %v987 = vld [vmem:[%s986] sm:$0xff]
    %v988 = vld [vmem:[%s986 + $0x8] sm:$0xff]
    %v989 = vld [vmem:[%s986 + $0x10] sm:$0xff]
    %v990 = vld [vmem:[%s986 + $0x18] sm:$0xff]
    %v991 = vld [vmem:[#allocation11 + $0x7] sm:$0x1]
    %v992 = vlaneseq
    %v993 = vshrl.u32 %v992, 7
    %v994 = vsub.s32 0, %v993
    %v995 = vrot.slane %v991, %v994
    %v997 = vsel %vm139, %v985, 0
    %999 = vmatprep.subr.mxu0 0.0
    %1000 = vmatpush1.msra.mxu0 0.0
    %1001 = vmatprep.subr.mxu0 0.0
    %1002 = vmatpush1.msra.mxu0 0.0
    %1003 = vmatprep.subr.mxu0 0.0
    %1004 = vmatpush1.msra.mxu0 0.0
    %1005 = vmatprep.subr.mxu0 0.0
    %1006 = vmatpush1.msra.mxu0 0.0
    %1007 = vmatprep.subr.mxu0 0.0
    %1008 = vmatpush1.msra.mxu0 0.0
    %1009 = vmatprep.subr.mxu0 0.0
    %1010 = vmatpush1.msra.mxu0 0.0
    %1011 = vmatprep.subr.mxu0 0.0
    %1012 = vmatpush1.msra.mxu0 0.0
    %1013 = vmatprep.subr.mxu0 0.0
    %1014 = vmatpush1.msra.mxu0 0.0
    %1015 = vmatprep.subr.mxu0 0.0
    %1016 = vmatpush1.msra.mxu0 0.0
    %1017 = vmatprep.subr.mxu0 0.0
    %1018 = vmatpush1.msra.mxu0 0.0
    %1019 = vmatprep.subr.mxu0 0.0
    %1020 = vmatpush1.msra.mxu0 0.0
    %1021 = vmatprep.subr.mxu0 0.0
    %1022 = vmatpush1.msra.mxu0 0.0
    %1023 = vmatprep.subr.mxu0 0.0
    %1024 = vmatpush1.msra.mxu0 %v990
    %1025 = vmatprep.subr.mxu0 0.0
    %1026 = vmatpush1.msra.mxu0 %v989
    %1027 = vmatprep.subr.mxu0 0.0
    %1028 = vmatpush1.msra.mxu0 %v988
    %1029 = vmatprep.subr.mxu0 0.0
    %1030 = vmatpush1.msra.mxu0 %v987
    %1031 = vmatprep.subr.mxu0 0.0
    %1032 = vmatpush2.msra.mxu0 0.0
    %1033 = vmatprep.subr.mxu0 0.0
    %1034 = vmatpush2.msra.mxu0 0.0
    %1035 = vmatprep.subr.mxu0 0.0
    %1036 = vmatpush2.msra.mxu0 0.0
    %1037 = vmatprep.subr.mxu0 0.0
    %1038 = vmatpush2.msra.mxu0 0.0
    %1039 = vmatprep.subr.mxu0 0.0
    %1040 = vmatpush2.msra.mxu0 0.0
    %1041 = vmatprep.subr.mxu0 0.0
    %1042 = vmatpush2.msra.mxu0 0.0
    %1043 = vmatprep.subr.mxu0 0.0
    %1044 = vmatpush2.msra.mxu0 0.0
    %1045 = vmatprep.subr.mxu0 0.0
    %1046 = vmatpush2.msra.mxu0 0.0
    %1047 = vmatprep.subr.mxu0 0.0
    %1048 = vmatpush2.msra.mxu0 0.0
    %1049 = vmatprep.subr.mxu0 0.0
    %1050 = vmatpush2.msra.mxu0 0.0
    %1051 = vmatprep.subr.mxu0 0.0
    %1052 = vmatpush2.msra.mxu0 0.0
    %1053 = vmatprep.subr.mxu0 0.0
    %1054 = vmatpush2.msra.mxu0 0.0
    %1055 = vmatprep.subr.mxu0 0.0
    %1056 = vmatpush2.msra.mxu0 0.0
    %1057 = vmatprep.subr.mxu0 0.0
    %1058 = vmatpush2.msra.mxu0 0.0
    %1059 = vmatprep.subr.mxu0 0.0
    %1060 = vmatpush2.msra.mxu0 0.0
    %1061 = vmatprep.subr.mxu0 0.0
    %1062 = vmatpush2.msra.mxu0 0.0
    %1063 = vmatprep.mubr.f32.mxu0 0.0
    %1064 = vmatmul.mubr.f32.gmra.mxu0 %v997
    %v1065 = vpop.f32.mrf.mxu0
    %v1066 = vadd.f32 %v995, %v1065
    %v1067 = vpop.f32.mrf.mxu0
    %1068 = vdwg.mxu0
    %vm1069 = vcmp.ge.f32.partialorder %v1066, 0.0
    %v1070 = vmul.f32 %v1066, 0.2
    %v1071 = vsel %vm1069, %v1066, %v1070
    %v1072 = vld [vmem:[#allocation13] sm:$0xff]
    %v1073 = vld [vmem:[#allocation13 + $0x8] sm:$0xff]
    %v1074 = vld [vmem:[#allocation13 + $0x10] sm:$0xff]
    %v1075 = vld [vmem:[#allocation13 + $0x18] sm:$0xff]
    %v1076 = vld [vmem:[#allocation13 + $0x20] sm:$0xff]
    %v1077 = vld [vmem:[#allocation13 + $0x28] sm:$0xff]
    %v1078 = vld [vmem:[#allocation13 + $0x30] sm:$0xff]
    %v1079 = vld [vmem:[#allocation13 + $0x38] sm:$0xff]
    %v1080 = vld [vmem:[#allocation13 + $0x40] sm:$0xff]
    %v1081 = vld [vmem:[#allocation13 + $0x48] sm:$0xff]
    %v1082 = vld [vmem:[#allocation13 + $0x50] sm:$0xff]
    %v1083 = vld [vmem:[#allocation13 + $0x58] sm:$0xff]
    %v1084 = vld [vmem:[#allocation13 + $0x60] sm:$0xff]
    %v1085 = vld [vmem:[#allocation13 + $0x68] sm:$0xff]
    %v1086 = vld [vmem:[#allocation13 + $0x70] sm:$0xff]
    %v1087 = vld [vmem:[#allocation13 + $0x78] sm:$0xff]
    %v1088 = vld [vmem:[#allocation13 + $0x80] sm:$0xff]
    %v1089 = vld [vmem:[#allocation13 + $0x88] sm:$0xff]
    %v1090 = vld [vmem:[#allocation13 + $0x90] sm:$0xff]
    %v1091 = vld [vmem:[#allocation13 + $0x98] sm:$0xff]
    %v1092 = vld [vmem:[#allocation13 + $0xa0] sm:$0xff]
    %v1093 = vld [vmem:[#allocation13 + $0xa8] sm:$0xff]
    %v1094 = vld [vmem:[#allocation13 + $0xb0] sm:$0xff]
    %v1095 = vld [vmem:[#allocation13 + $0xb8] sm:$0xff]
    %v1096 = vld [vmem:[#allocation13 + $0xc0] sm:$0xff]
    %v1097 = vld [vmem:[#allocation13 + $0xc8] sm:$0xff]
    %v1098 = vld [vmem:[#allocation13 + $0xd0] sm:$0xff]
    %v1099 = vld [vmem:[#allocation13 + $0xd8] sm:$0xff]
    %v1100 = vld [vmem:[#allocation13 + $0xe0] sm:$0xff]
    %v1101 = vld [vmem:[#allocation13 + $0xe8] sm:$0xff]
    %v1102 = vld [vmem:[#allocation13 + $0xf0] sm:$0xff]
    %v1103 = vld [vmem:[#allocation13 + $0xf8] sm:$0xff]
    %v1104 = vld [vmem:[#allocation13 + $0x100] sm:$0xff]
    %v1105 = vld [vmem:[#allocation13 + $0x108] sm:$0xff]
    %v1106 = vld [vmem:[#allocation13 + $0x110] sm:$0xff]
    %v1107 = vld [vmem:[#allocation13 + $0x118] sm:$0xff]
    %v1108 = vld [vmem:[%s11] sm:$0xff]
    %v1109 = vld [vmem:[%s11 + $0x8] sm:$0x1]
    %v1112 = vlaneseq
    %v1113 = vshrl.u32 %v1112, 7
    %v1114 = vsub.s32 0, %v1113
    %v1115 = vrot.slane %v1108, %v1114
    %v1116 = vlaneseq
    %v1117 = vshrl.u32 %v1116, 7
    %v1118 = vsub.s32 1, %v1117
    %v1119 = vrot.slane %v1108, %v1118
    %v1120 = vlaneseq
    %v1121 = vshrl.u32 %v1120, 7
    %v1122 = vsub.s32 2, %v1121
    %v1123 = vrot.slane %v1108, %v1122
    %v1124 = vlaneseq
    %v1125 = vshrl.u32 %v1124, 7
    %v1126 = vsub.s32 3, %v1125
    %v1127 = vrot.slane %v1108, %v1126
    %v1128 = vlaneseq
    %v1129 = vshrl.u32 %v1128, 7
    %v1130 = vsub.s32 4, %v1129
    %v1131 = vrot.slane %v1108, %v1130
    %v1132 = vlaneseq
    %v1133 = vshrl.u32 %v1132, 7
    %v1134 = vsub.s32 5, %v1133
    %v1135 = vrot.slane %v1108, %v1134
    %v1136 = vlaneseq
    %v1137 = vshrl.u32 %v1136, 7
    %v1138 = vsub.s32 6, %v1137
    %v1139 = vrot.slane %v1108, %v1138
    %v1140 = vlaneseq
    %v1141 = vshrl.u32 %v1140, 7
    %v1142 = vsub.s32 7, %v1141
    %v1143 = vrot.slane %v1108, %v1142
    %v1144 = vlaneseq
    %v1145 = vshrl.u32 %v1144, 7
    %v1146 = vsub.s32 0, %v1145
    %v1147 = vrot.slane %v1109, %v1146
    %v1158 = vsel %vm139, %v1071, 0
    %1160 = vmatprep.subr.mxu0 0.0
    %1161 = vmatpush1.msra.mxu0 0.0
    %1162 = vmatprep.subr.mxu0 0.0
    %1163 = vmatpush1.msra.mxu0 0.0
    %1164 = vmatprep.subr.mxu0 0.0
    %1165 = vmatpush1.msra.mxu0 0.0
    %1166 = vmatprep.subr.mxu0 0.0
    %1167 = vmatpush1.msra.mxu0 0.0
    %1168 = vmatprep.subr.mxu0 0.0
    %1169 = vmatpush1.msra.mxu0 0.0
    %1170 = vmatprep.subr.mxu0 0.0
    %1171 = vmatpush1.msra.mxu0 0.0
    %1172 = vmatprep.subr.mxu0 0.0
    %1173 = vmatpush1.msra.mxu0 0.0
    %1174 = vmatprep.subr.mxu0 0.0
    %1175 = vmatpush1.msra.mxu0 0.0
    %1176 = vmatprep.subr.mxu0 0.0
    %1177 = vmatpush1.msra.mxu0 0.0
    %1178 = vmatprep.subr.mxu0 0.0
    %1179 = vmatpush1.msra.mxu0 0.0
    %1180 = vmatprep.subr.mxu0 0.0
    %1181 = vmatpush1.msra.mxu0 0.0
    %1182 = vmatprep.subr.mxu0 0.0
    %1183 = vmatpush1.msra.mxu0 0.0
    %1184 = vmatprep.subr.mxu0 %v1100
    %1185 = vmatpush1.msra.mxu0 %v1099
    %1186 = vmatprep.subr.mxu0 %v1091
    %1187 = vmatpush1.msra.mxu0 %v1090
    %1188 = vmatprep.subr.mxu0 %v1082
    %1189 = vmatpush1.msra.mxu0 %v1081
    %1190 = vmatprep.subr.mxu0 %v1073
    %1191 = vmatpush1.msra.mxu0 %v1072
    %1192 = vmatprep.subr.mxu0 0.0
    %1193 = vmatpush2.msra.mxu0 0.0
    %1194 = vmatprep.subr.mxu0 0.0
    %1195 = vmatpush2.msra.mxu0 0.0
    %1196 = vmatprep.subr.mxu0 0.0
    %1197 = vmatpush2.msra.mxu0 0.0
    %1198 = vmatprep.subr.mxu0 0.0
    %1199 = vmatpush2.msra.mxu0 0.0
    %1200 = vmatprep.subr.mxu0 0.0
    %1201 = vmatpush2.msra.mxu0 0.0
    %1202 = vmatprep.subr.mxu0 0.0
    %1203 = vmatpush2.msra.mxu0 0.0
    %1204 = vmatprep.subr.mxu0 0.0
    %1205 = vmatpush2.msra.mxu0 0.0
    %1206 = vmatprep.subr.mxu0 0.0
    %1207 = vmatpush2.msra.mxu0 0.0
    %1208 = vmatprep.subr.mxu0 0.0
    %1209 = vmatpush2.msra.mxu0 0.0
    %1210 = vmatprep.subr.mxu0 0.0
    %1211 = vmatpush2.msra.mxu0 0.0
    %1212 = vmatprep.subr.mxu0 0.0
    %1213 = vmatpush2.msra.mxu0 0.0
    %1214 = vmatprep.subr.mxu0 0.0
    %1215 = vmatpush2.msra.mxu0 0.0
    %1216 = vmatprep.subr.mxu0 0.0
    %1217 = vmatpush2.msra.mxu0 0.0
    %1218 = vmatprep.subr.mxu0 0.0
    %1219 = vmatpush2.msra.mxu0 0.0
    %1220 = vmatprep.subr.mxu0 0.0
    %1221 = vmatpush2.msra.mxu0 0.0
    %1222 = vmatprep.subr.mxu0 0.0
    %1223 = vmatpush2.msra.mxu0 0.0
    %1224 = vmatprep.mubr.f32.mxu0 0.0
    %1225 = vmatmul.mubr.f32.gmra.mxu0 %v1158
    %v1226 = vpop.f32.mrf.mxu0
    %v1227 = vadd.f32 %v1115, %v1226
    %v1228 = vpop.f32.mrf.mxu0
    %v1229 = vadd.f32 %v1119, %v1228
    %1230 = vdwg.mxu0
    %1231 = vmatprep.subr.mxu0 0.0
    %1232 = vmatpush1.msra.mxu0 0.0
    %1233 = vmatprep.subr.mxu0 0.0
    %1234 = vmatpush1.msra.mxu0 0.0
    %1235 = vmatprep.subr.mxu0 0.0
    %1236 = vmatpush1.msra.mxu0 0.0
    %1237 = vmatprep.subr.mxu0 0.0
    %1238 = vmatpush1.msra.mxu0 0.0
    %1239 = vmatprep.subr.mxu0 0.0
    %1240 = vmatpush1.msra.mxu0 0.0
    %1241 = vmatprep.subr.mxu0 0.0
    %1242 = vmatpush1.msra.mxu0 0.0
    %1243 = vmatprep.subr.mxu0 0.0
    %1244 = vmatpush1.msra.mxu0 0.0
    %1245 = vmatprep.subr.mxu0 0.0
    %1246 = vmatpush1.msra.mxu0 0.0
    %1247 = vmatprep.subr.mxu0 0.0
    %1248 = vmatpush1.msra.mxu0 0.0
    %1249 = vmatprep.subr.mxu0 0.0
    %1250 = vmatpush1.msra.mxu0 0.0
    %1251 = vmatprep.subr.mxu0 0.0
    %1252 = vmatpush1.msra.mxu0 0.0
    %1253 = vmatprep.subr.mxu0 0.0
    %1254 = vmatpush1.msra.mxu0 0.0
    %1255 = vmatprep.subr.mxu0 %v1102
    %1256 = vmatpush1.msra.mxu0 %v1101
    %1257 = vmatprep.subr.mxu0 %v1093
    %1258 = vmatpush1.msra.mxu0 %v1092
    %1259 = vmatprep.subr.mxu0 %v1084
    %1260 = vmatpush1.msra.mxu0 %v1083
    %1261 = vmatprep.subr.mxu0 %v1075
    %1262 = vmatpush1.msra.mxu0 %v1074
    %1263 = vmatprep.subr.mxu0 0.0
    %1264 = vmatpush2.msra.mxu0 0.0
    %1265 = vmatprep.subr.mxu0 0.0
    %1266 = vmatpush2.msra.mxu0 0.0
    %1267 = vmatprep.subr.mxu0 0.0
    %1268 = vmatpush2.msra.mxu0 0.0
    %1269 = vmatprep.subr.mxu0 0.0
    %1270 = vmatpush2.msra.mxu0 0.0
    %1271 = vmatprep.subr.mxu0 0.0
    %1272 = vmatpush2.msra.mxu0 0.0
    %1273 = vmatprep.subr.mxu0 0.0
    %1274 = vmatpush2.msra.mxu0 0.0
    %1275 = vmatprep.subr.mxu0 0.0
    %1276 = vmatpush2.msra.mxu0 0.0
    %1277 = vmatprep.subr.mxu0 0.0
    %1278 = vmatpush2.msra.mxu0 0.0
    %1279 = vmatprep.subr.mxu0 0.0
    %1280 = vmatpush2.msra.mxu0 0.0
    %1281 = vmatprep.subr.mxu0 0.0
    %1282 = vmatpush2.msra.mxu0 0.0
    %1283 = vmatprep.subr.mxu0 0.0
    %1284 = vmatpush2.msra.mxu0 0.0
    %1285 = vmatprep.subr.mxu0 0.0
    %1286 = vmatpush2.msra.mxu0 0.0
    %1287 = vmatprep.subr.mxu0 0.0
    %1288 = vmatpush2.msra.mxu0 0.0
    %1289 = vmatprep.subr.mxu0 0.0
    %1290 = vmatpush2.msra.mxu0 0.0
    %1291 = vmatprep.subr.mxu0 0.0
    %1292 = vmatpush2.msra.mxu0 0.0
    %1293 = vmatprep.subr.mxu0 0.0
    %1294 = vmatpush2.msra.mxu0 0.0
    %1295 = vmatprep.mubr.f32.mxu0 0.0
    %1296 = vmatmul.mubr.f32.gmra.mxu0 %v1158
    %v1297 = vpop.f32.mrf.mxu0
    %v1298 = vadd.f32 %v1123, %v1297
    %v1299 = vpop.f32.mrf.mxu0
    %v1300 = vadd.f32 %v1127, %v1299
    %1301 = vdwg.mxu0
    %1302 = vmatprep.subr.mxu0 0.0
    %1303 = vmatpush1.msra.mxu0 0.0
    %1304 = vmatprep.subr.mxu0 0.0
    %1305 = vmatpush1.msra.mxu0 0.0
    %1306 = vmatprep.subr.mxu0 0.0
    %1307 = vmatpush1.msra.mxu0 0.0
    %1308 = vmatprep.subr.mxu0 0.0
    %1309 = vmatpush1.msra.mxu0 0.0
    %1310 = vmatprep.subr.mxu0 0.0
    %1311 = vmatpush1.msra.mxu0 0.0
    %1312 = vmatprep.subr.mxu0 0.0
    %1313 = vmatpush1.msra.mxu0 0.0
    %1314 = vmatprep.subr.mxu0 0.0
    %1315 = vmatpush1.msra.mxu0 0.0
    %1316 = vmatprep.subr.mxu0 0.0
    %1317 = vmatpush1.msra.mxu0 0.0
    %1318 = vmatprep.subr.mxu0 0.0
    %1319 = vmatpush1.msra.mxu0 0.0
    %1320 = vmatprep.subr.mxu0 0.0
    %1321 = vmatpush1.msra.mxu0 0.0
    %1322 = vmatprep.subr.mxu0 0.0
    %1323 = vmatpush1.msra.mxu0 0.0
    %1324 = vmatprep.subr.mxu0 0.0
    %1325 = vmatpush1.msra.mxu0 0.0
    %1326 = vmatprep.subr.mxu0 %v1104
    %1327 = vmatpush1.msra.mxu0 %v1103
    %1328 = vmatprep.subr.mxu0 %v1095
    %1329 = vmatpush1.msra.mxu0 %v1094
    %1330 = vmatprep.subr.mxu0 %v1086
    %1331 = vmatpush1.msra.mxu0 %v1085
    %1332 = vmatprep.subr.mxu0 %v1077
    %1333 = vmatpush1.msra.mxu0 %v1076
    %1334 = vmatprep.subr.mxu0 0.0
    %1335 = vmatpush2.msra.mxu0 0.0
    %1336 = vmatprep.subr.mxu0 0.0
    %1337 = vmatpush2.msra.mxu0 0.0
    %1338 = vmatprep.subr.mxu0 0.0
    %1339 = vmatpush2.msra.mxu0 0.0
    %1340 = vmatprep.subr.mxu0 0.0
    %1341 = vmatpush2.msra.mxu0 0.0
    %1342 = vmatprep.subr.mxu0 0.0
    %1343 = vmatpush2.msra.mxu0 0.0
    %1344 = vmatprep.subr.mxu0 0.0
    %1345 = vmatpush2.msra.mxu0 0.0
    %1346 = vmatprep.subr.mxu0 0.0
    %1347 = vmatpush2.msra.mxu0 0.0
    %1348 = vmatprep.subr.mxu0 0.0
    %1349 = vmatpush2.msra.mxu0 0.0
    %1350 = vmatprep.subr.mxu0 0.0
    %1351 = vmatpush2.msra.mxu0 0.0
    %1352 = vmatprep.subr.mxu0 0.0
    %1353 = vmatpush2.msra.mxu0 0.0
    %1354 = vmatprep.subr.mxu0 0.0
    %1355 = vmatpush2.msra.mxu0 0.0
    %1356 = vmatprep.subr.mxu0 0.0
    %1357 = vmatpush2.msra.mxu0 0.0
    %1358 = vmatprep.subr.mxu0 0.0
    %1359 = vmatpush2.msra.mxu0 0.0
    %1360 = vmatprep.subr.mxu0 0.0
    %1361 = vmatpush2.msra.mxu0 0.0
    %1362 = vmatprep.subr.mxu0 0.0
    %1363 = vmatpush2.msra.mxu0 0.0
    %1364 = vmatprep.subr.mxu0 0.0
    %1365 = vmatpush2.msra.mxu0 0.0
    %1366 = vmatprep.mubr.f32.mxu0 0.0
    %1367 = vmatmul.mubr.f32.gmra.mxu0 %v1158
    %v1368 = vpop.f32.mrf.mxu0
    %v1369 = vadd.f32 %v1131, %v1368
    %v1370 = vpop.f32.mrf.mxu0
    %v1371 = vadd.f32 %v1135, %v1370
    %1372 = vdwg.mxu0
    %1373 = vmatprep.subr.mxu0 0.0
    %1374 = vmatpush1.msra.mxu0 0.0
    %1375 = vmatprep.subr.mxu0 0.0
    %1376 = vmatpush1.msra.mxu0 0.0
    %1377 = vmatprep.subr.mxu0 0.0
    %1378 = vmatpush1.msra.mxu0 0.0
    %1379 = vmatprep.subr.mxu0 0.0
    %1380 = vmatpush1.msra.mxu0 0.0
    %1381 = vmatprep.subr.mxu0 0.0
    %1382 = vmatpush1.msra.mxu0 0.0
    %1383 = vmatprep.subr.mxu0 0.0
    %1384 = vmatpush1.msra.mxu0 0.0
    %1385 = vmatprep.subr.mxu0 0.0
    %1386 = vmatpush1.msra.mxu0 0.0
    %1387 = vmatprep.subr.mxu0 0.0
    %1388 = vmatpush1.msra.mxu0 0.0
    %1389 = vmatprep.subr.mxu0 0.0
    %1390 = vmatpush1.msra.mxu0 0.0
    %1391 = vmatprep.subr.mxu0 0.0
    %1392 = vmatpush1.msra.mxu0 0.0
    %1393 = vmatprep.subr.mxu0 0.0
    %1394 = vmatpush1.msra.mxu0 0.0
    %1395 = vmatprep.subr.mxu0 0.0
    %1396 = vmatpush1.msra.mxu0 0.0
    %1397 = vmatprep.subr.mxu0 %v1106
    %1398 = vmatpush1.msra.mxu0 %v1105
    %1399 = vmatprep.subr.mxu0 %v1097
    %1400 = vmatpush1.msra.mxu0 %v1096
    %1401 = vmatprep.subr.mxu0 %v1088
    %1402 = vmatpush1.msra.mxu0 %v1087
    %1403 = vmatprep.subr.mxu0 %v1079
    %1404 = vmatpush1.msra.mxu0 %v1078
    %1405 = vmatprep.subr.mxu0 0.0
    %1406 = vmatpush2.msra.mxu0 0.0
    %1407 = vmatprep.subr.mxu0 0.0
    %1408 = vmatpush2.msra.mxu0 0.0
    %1409 = vmatprep.subr.mxu0 0.0
    %1410 = vmatpush2.msra.mxu0 0.0
    %1411 = vmatprep.subr.mxu0 0.0
    %1412 = vmatpush2.msra.mxu0 0.0
    %1413 = vmatprep.subr.mxu0 0.0
    %1414 = vmatpush2.msra.mxu0 0.0
    %1415 = vmatprep.subr.mxu0 0.0
    %1416 = vmatpush2.msra.mxu0 0.0
    %1417 = vmatprep.subr.mxu0 0.0
    %1418 = vmatpush2.msra.mxu0 0.0
    %1419 = vmatprep.subr.mxu0 0.0
    %1420 = vmatpush2.msra.mxu0 0.0
    %1421 = vmatprep.subr.mxu0 0.0
    %1422 = vmatpush2.msra.mxu0 0.0
    %1423 = vmatprep.subr.mxu0 0.0
    %1424 = vmatpush2.msra.mxu0 0.0
    %1425 = vmatprep.subr.mxu0 0.0
    %1426 = vmatpush2.msra.mxu0 0.0
    %1427 = vmatprep.subr.mxu0 0.0
    %1428 = vmatpush2.msra.mxu0 0.0
    %1429 = vmatprep.subr.mxu0 0.0
    %1430 = vmatpush2.msra.mxu0 0.0
    %1431 = vmatprep.subr.mxu0 0.0
    %1432 = vmatpush2.msra.mxu0 0.0
    %1433 = vmatprep.subr.mxu0 0.0
    %1434 = vmatpush2.msra.mxu0 0.0
    %1435 = vmatprep.subr.mxu0 0.0
    %1436 = vmatpush2.msra.mxu0 0.0
    %1437 = vmatprep.mubr.f32.mxu0 0.0
    %1438 = vmatmul.mubr.f32.gmra.mxu0 %v1158
    %v1439 = vpop.f32.mrf.mxu0
    %v1440 = vadd.f32 %v1139, %v1439
    %v1441 = vpop.f32.mrf.mxu0
    %v1442 = vadd.f32 %v1143, %v1441
    %1443 = vdwg.mxu0
    %1444 = vmatprep.subr.mxu0 0.0
    %1445 = vmatpush1.msra.mxu0 0.0
    %1446 = vmatprep.subr.mxu0 0.0
    %1447 = vmatpush1.msra.mxu0 0.0
    %1448 = vmatprep.subr.mxu0 0.0
    %1449 = vmatpush1.msra.mxu0 0.0
    %1450 = vmatprep.subr.mxu0 0.0
    %1451 = vmatpush1.msra.mxu0 0.0
    %1452 = vmatprep.subr.mxu0 0.0
    %1453 = vmatpush1.msra.mxu0 0.0
    %1454 = vmatprep.subr.mxu0 0.0
    %1455 = vmatpush1.msra.mxu0 0.0
    %1456 = vmatprep.subr.mxu0 0.0
    %1457 = vmatpush1.msra.mxu0 0.0
    %1458 = vmatprep.subr.mxu0 0.0
    %1459 = vmatpush1.msra.mxu0 0.0
    %1460 = vmatprep.subr.mxu0 0.0
    %1461 = vmatpush1.msra.mxu0 0.0
    %1462 = vmatprep.subr.mxu0 0.0
    %1463 = vmatpush1.msra.mxu0 0.0
    %1464 = vmatprep.subr.mxu0 0.0
    %1465 = vmatpush1.msra.mxu0 0.0
    %1466 = vmatprep.subr.mxu0 0.0
    %1467 = vmatpush1.msra.mxu0 0.0
    %1468 = vmatprep.subr.mxu0 0.0
    %1469 = vmatpush1.msra.mxu0 %v1107
    %1470 = vmatprep.subr.mxu0 0.0
    %1471 = vmatpush1.msra.mxu0 %v1098
    %1472 = vmatprep.subr.mxu0 0.0
    %1473 = vmatpush1.msra.mxu0 %v1089
    %1474 = vmatprep.subr.mxu0 0.0
    %1475 = vmatpush1.msra.mxu0 %v1080
    %1476 = vmatprep.subr.mxu0 0.0
    %1477 = vmatpush2.msra.mxu0 0.0
    %1478 = vmatprep.subr.mxu0 0.0
    %1479 = vmatpush2.msra.mxu0 0.0
    %1480 = vmatprep.subr.mxu0 0.0
    %1481 = vmatpush2.msra.mxu0 0.0
    %1482 = vmatprep.subr.mxu0 0.0
    %1483 = vmatpush2.msra.mxu0 0.0
    %1484 = vmatprep.subr.mxu0 0.0
    %1485 = vmatpush2.msra.mxu0 0.0
    %1486 = vmatprep.subr.mxu0 0.0
    %1487 = vmatpush2.msra.mxu0 0.0
    %1488 = vmatprep.subr.mxu0 0.0
    %1489 = vmatpush2.msra.mxu0 0.0
    %1490 = vmatprep.subr.mxu0 0.0
    %1491 = vmatpush2.msra.mxu0 0.0
    %1492 = vmatprep.subr.mxu0 0.0
    %1493 = vmatpush2.msra.mxu0 0.0
    %1494 = vmatprep.subr.mxu0 0.0
    %1495 = vmatpush2.msra.mxu0 0.0
    %1496 = vmatprep.subr.mxu0 0.0
    %1497 = vmatpush2.msra.mxu0 0.0
    %1498 = vmatprep.subr.mxu0 0.0
    %1499 = vmatpush2.msra.mxu0 0.0
    %1500 = vmatprep.subr.mxu0 0.0
    %1501 = vmatpush2.msra.mxu0 0.0
    %1502 = vmatprep.subr.mxu0 0.0
    %1503 = vmatpush2.msra.mxu0 0.0
    %1504 = vmatprep.subr.mxu0 0.0
    %1505 = vmatpush2.msra.mxu0 0.0
    %1506 = vmatprep.subr.mxu0 0.0
    %1507 = vmatpush2.msra.mxu0 0.0
    %1508 = vmatprep.mubr.f32.mxu0 0.0
    %1509 = vmatmul.mubr.f32.gmra.mxu0 %v1158
    %v1510 = vpop.f32.mrf.mxu0
    %v1511 = vadd.f32 %v1147, %v1510
    %v1512 = vpop.f32.mrf.mxu0
    %1513 = vdwg.mxu0
    %v1523 = vcombine.low %v1227, %v1229
    %v1524 = vcombine.low %v1298, %v1300
    %v1526 = vunpack.c.l.s4 1983009808
    %v1527 = vunpack.c.0.s8 %v1526
    %v1528 = vlaneseq
    %v1529 = vshrl.u32 %v1528, 7
    %v1530 = vsub.s32 %v1527, %v1529
    %v1531 = vrot.slane %v1523, %v1530
    %v1533 = vunpack.c.l.s4 1983009808
    %v1534 = vunpack.c.0.s8 %v1533
    %v1535 = vlaneseq
    %v1536 = vshrl.u32 %v1535, 7
    %v1537 = vsub.s32 %v1534, %v1536
    %v1538 = vrot.slane %v1524, %v1537
    %v1539 = vcombine.low %v1531, %v1538
    %v1540 = vcombine.low %v1369, %v1371
    %v1541 = vcombine.low %v1440, %v1442
    %v1543 = vunpack.c.l.s4 1983009808
    %v1544 = vunpack.c.0.s8 %v1543
    %v1545 = vlaneseq
    %v1546 = vshrl.u32 %v1545, 7
    %v1547 = vsub.s32 %v1544, %v1546
    %v1548 = vrot.slane %v1540, %v1547
    %v1550 = vunpack.c.l.s4 1983009808
    %v1551 = vunpack.c.0.s8 %v1550
    %v1552 = vlaneseq
    %v1553 = vshrl.u32 %v1552, 7
    %v1554 = vsub.s32 %v1551, %v1553
    %v1555 = vrot.slane %v1541, %v1554
    %v1556 = vcombine.low %v1548, %v1555
    %v1558 = vunpack.c.l.s4 1983009808
    %v1559 = vunpack.c.0.s8 %v1558
    %v1560 = vlaneseq
    %v1561 = vshrl.u32 %v1560, 7
    %v1562 = vsub.s32 %v1559, %v1561
    %v1563 = vrot.slane %v1511, %v1562
    %1567 = vst [vmem:[#allocation14] sm:$0xff] %v1539
    %1568 = vst [vmem:[#allocation14 + $0x8] sm:$0xff] %v1556
    %vm1569 = vcmask 123904
    %1570 = vst.msk [vmem:[#allocation14 + $0x10] sm:$0x3] %vm1569, %v1563
    // Predicated region
    $region78: #{tpu_custom_call.1} parent=1 // pred_check
      _
    $region79: #{tpu_custom_call.1} parent=1 // pred_check_branch
      %1572 = sbr.rel (0) target = $region81
    $region80: #{tpu_custom_call.1} parent=1 // pred_region
      %s1574 = ssub.s32 288, 288
      %1575 = vsyncadd [#allocation4], %s1574
      %s1577 = sshll.u32 [#allocation14], 4
      %s1578 = int_to_ptr.vmem [resolvable:$true] %s1577
      %1580 = dma.vmem_to_hbm [thread:$0]  %s1578, 288, %s12, [#allocation4]
    $region81: #{tpu_custom_call.1} parent=1 // pred_fallthru
      _
    // Predicated region
    $region82: #{tpu_custom_call.1} parent=1 // pred_check
      _
    $region83: #{tpu_custom_call.1} parent=1 // pred_check_branch
      %1582 = sbr.rel (0) target = $region85
    $region84: #{tpu_custom_call.1} parent=1 // pred_region
      %1583 = dma.done [#allocation4], 288
    $region85: #{tpu_custom_call.1} parent=1 // pred_fallthru
      _
    %1584 = vsyncpa [#allocation3], 1
    %1585 = vsyncpa [#allocation6], 1
    %1586 = vsyncpa [#allocation9], 1
    %1587 = vsyncpa [#allocation12], 1
    %1588 = vsyncpa [#allocation4], 1

</llo_original>
